<compile_context>
chip_gen: v6e
topology: v6e:2x2x1
jax: 0.10.0
libtpu: 0.0.40
codegen_flags: <defaults>
</compile_context>

<pallas_src>
import math
import numpy as np
import jax
import jax.numpy as jnp
from jax import lax
from jax.experimental import pallas as pl
from jax.experimental.pallas import tpu as pltpu


# ----------------------------- Pallas kernel ---------------------------------
def _rope_mha_kernel(x_ref, wqkv_ref, wo_ref, bo_ref,
                     cos_ref, sina_ref, sinb_ref, mask_ref,
                     out_ref, cat_ref):
    """Grid = (B,).  One step = full multi-head attention for one batch element."""
    x = x_ref[0]                              # (M, D)
    m, d = x.shape
    hd = cos_ref.shape[1]                     # H * D (lane-dense, 128 here)
    n_heads = hd // d
    scale = 1.0 / math.sqrt(d)

    # --- fused QKV projection for all heads: (M, D) @ (D, 3*H*D) ---
    qkv = jnp.dot(x, wqkv_ref[...], preferred_element_type=jnp.float32)
    q = qkv[:, :hd]                           # (M, H*D)  128-lane aligned slices
    k = qkv[:, hd:2 * hd]
    v = qkv[:, 2 * hd:]

    cos = cos_ref[...]                        # (M, H*D)
    sin_a = sina_ref[...]                     # sin at even lanes, 0 at odd
    sin_b = sinb_ref[...]                     # -sin at odd lanes, 0 at even

    def rope(t):
        # pair-swap via XLU rolls:
        #   t_next[j] = t[j+1]   (consumed only at even lanes via sin_a)
        #   t_prev[j] = t[j-1]   (consumed only at odd  lanes via sin_b)
        t_next = pltpu.roll(t, shift=hd - 1, axis=1)
        t_prev = pltpu.roll(t, shift=1, axis=1)
        return t * cos + t_next * sin_a + t_prev * sin_b

    q = rope(q)
    k = rope(k)

    mask = mask_ref[...]                      # (M, M) additive causal mask (0 / -1e30)

    # --- per-head causal attention (heads are only D=32 wide by construction) ---
    for h in range(n_heads):                  # static unroll, H = 4
        qh = q[:, h * d:(h + 1) * d]
        kh = k[:, h * d:(h + 1) * d]
        vh = v[:, h * d:(h + 1) * d]
        s = lax.dot_general(qh, kh,
                            dimension_numbers=(((1,), (1,)), ((), ())),
                            preferred_element_type=jnp.float32) * scale + mask
        s_max = jnp.max(s, axis=-1, keepdims=True)
        p = jnp.exp(s - s_max)
        denom = jnp.sum(p, axis=-1, keepdims=True)
        probs = p * pl.reciprocal(denom, approx=True)
        attn = jnp.dot(probs, vh, preferred_element_type=jnp.float32)   # (M, D)
        cat_ref[:, pl.ds(h * d, d)] = attn    # pack head into its lane slot

    # --- single lane-dense output projection: (M, H*D) @ (H*D, D) + bias ---
    out_ref[0] = (jnp.dot(cat_ref[...], wo_ref[...],
                          preferred_element_type=jnp.float32)
                  + bo_ref[...])


def rope_mha_pallas(x, w_qkv, w_o, bo, cos, sin_a, sin_b, mask):
    """x: (B, M, D) f32.  w_qkv: (D, 3*H*D).  w_o: (H*D, D).  bo: (1, D).
    cos/sin_a/sin_b: (M, H*D).  mask: (M, M) additive causal mask."""
    B, M, D = x.shape
    HD = cos.shape[1]

    return pl.pallas_call(
        _rope_mha_kernel,
        out_shape=jax.ShapeDtypeStruct((B, M, D), jnp.float32),
        grid_spec=pltpu.PrefetchScalarGridSpec(
            num_scalar_prefetch=0,
            grid=(B,),
            in_specs=[
                pl.BlockSpec((1, M, D),   lambda b: (b, 0, 0)),   # x
                pl.BlockSpec((D, 3 * HD), lambda b: (0, 0)),      # w_qkv (resident)
                pl.BlockSpec((HD, D),     lambda b: (0, 0)),      # w_o   (resident)
                pl.BlockSpec((1, D),      lambda b: (0, 0)),      # bias
                pl.BlockSpec((M, HD),     lambda b: (0, 0)),      # cos
                pl.BlockSpec((M, HD),     lambda b: (0, 0)),      # sin_a
                pl.BlockSpec((M, HD),     lambda b: (0, 0)),      # sin_b
                pl.BlockSpec((M, M),      lambda b: (0, 0)),      # causal mask
            ],
            out_specs=pl.BlockSpec((1, M, D), lambda b: (b, 0, 0)),
            scratch_shapes=[pltpu.VMEM((M, HD), jnp.float32)],    # packed head outputs
        ),
        compiler_params=pltpu.CompilerParams(
            dimension_semantics=("parallel",)),                   # B across TCs on v7x
    )(x, w_qkv, w_o, bo, cos, sin_a, sin_b, mask)


# --------------------------- parameter / glue setup ---------------------------
def make_rope_tables(context_window, d, n_heads):
    """cos + split-signed sin tables realising the module's R matrices
    (including its `(i - 1)` exponent quirk), tiled across heads so RoPE is
    applied to the fused (M, H*D) Q/K in one shot."""
    cos = np.zeros((context_window, d), dtype=np.float32)
    sin_a = np.zeros((context_window, d), dtype=np.float32)   # multiplies t[j+1]
    sin_b = np.zeros((context_window, d), dtype=np.float32)   # multiplies t[j-1]
    for pos in range(context_window):
        for i in range(d // 2):
            theta = 10000.0 ** (-2.0 * (i - 1) / d)
            m_theta = pos * theta
            c, s = np.cos(m_theta), np.sin(m_theta)
            cos[pos, 2 * i] = c
            cos[pos, 2 * i + 1] = c
            sin_a[pos, 2 * i] = s          # q_rot[2i]   =  q[2i]*c + q[2i+1]*s
            sin_b[pos, 2 * i + 1] = -s     # q_rot[2i+1] = -q[2i]*s + q[2i+1]*c
    tile = lambda t: jnp.asarray(np.tile(t, (1, n_heads)))
    return tile(cos), tile(sin_a), tile(sin_b)


def make_causal_mask(m):
    keep = np.tril(np.ones((m, m), dtype=bool))
    return jnp.asarray(np.where(keep, 0.0, -1e30).astype(np.float32))


def make_full_R(context_window, d):
    """Dense rotary matrices exactly as get_rotary_matrix builds them (for the ref)."""
    R = np.zeros((context_window, d, d), dtype=np.float32)
    for pos in range(context_window):
        for i in range(d // 2):
            theta = 10000.0 ** (-2.0 * (i - 1) / d)
            m_theta = pos * theta
            R[pos, 2 * i, 2 * i] = np.cos(m_theta)
            R[pos, 2 * i, 2 * i + 1] = -np.sin(m_theta)
            R[pos, 2 * i + 1, 2 * i] = np.sin(m_theta)
            R[pos, 2 * i + 1, 2 * i + 1] = np.cos(m_theta)
    return jnp.asarray(R)


def reference_forward(x, Wq, Wk, Wv, Wo, bo, R):
    """Plain-JAX mirror of the torch module (eval mode)."""
    B, M, D = x.shape
    H = Wq.shape[0]
    heads = []
    for h in range(H):
        q = x @ Wq[h].T
        k = x @ Wk[h].T
        v = x @ Wv[h].T
        q_rot = jnp.einsum("bmd,mde->bme", q, R[:M])
        k_rot = jnp.einsum("bmd,mde->bme", k, R[:M])
        scores = jnp.einsum("bqd,bkd->bqk", q_rot, k_rot) / math.sqrt(D)
        mask = jnp.tril(jnp.ones((M, M), dtype=bool))
        scores = jnp.where(mask, scores, -jnp.inf)
        probs = jax.nn.softmax(scores, axis=-1)
        heads.append(probs @ v)
    cat = jnp.concatenate(heads, axis=-1)
    return cat @ Wo.T + bo


# ---------------------------------- main --------------------------------------
if __name__ == "__main__":
    # config: small shapes consistent with the module
    B, M, D, H = 2, 8, 32, 4          # batch, seq, d_model, n_heads
    CONTEXT = 16                      # context_window >= M

    key = jax.random.PRNGKey(0)
    kx, kq, kk, kv, kw, kb = jax.random.split(key, 6)

    x = jax.random.normal(kx, (B, M, D), dtype=jnp.float32)

    # torch-convention weights: Linear(D, D, bias=False) -> weight (D_out, D_in)
    Wq = jax.random.normal(kq, (H, D, D), dtype=jnp.float32) * 0.1
    Wk = jax.random.normal(kk, (H, D, D), dtype=jnp.float32) * 0.1
    Wv = jax.random.normal(kv, (H, D, D), dtype=jnp.float32) * 0.1
    Wo = jax.random.normal(kw, (D, H * D), dtype=jnp.float32) * 0.1   # Linear(H*D, D)
    bo = jax.random.normal(kb, (D,), dtype=jnp.float32) * 0.1

    # kernel-friendly fused / transposed forms
    # (x @ wq_cat)[:, h*D:(h+1)*D] == x @ Wq[h].T
    wq_cat = jnp.transpose(Wq, (2, 0, 1)).reshape(D, H * D)
    wk_cat = jnp.transpose(Wk, (2, 0, 1)).reshape(D, H * D)
    wv_cat = jnp.transpose(Wv, (2, 0, 1)).reshape(D, H * D)
    w_qkv = jnp.concatenate([wq_cat, wk_cat, wv_cat], axis=1)         # (D, 3*H*D)
    w_o = Wo.T                                                        # (H*D, D)
    bo2 = bo.reshape(1, D)

    cos_full, sina_full, sinb_full = make_rope_tables(CONTEXT, D, H)
    cos, sin_a, sin_b = cos_full[:M], sina_full[:M], sinb_full[:M]
    mask = make_causal_mask(M)

    out = rope_mha_pallas(x, w_qkv, w_o, bo2, cos, sin_a, sin_b, mask)
    out = jax.block_until_ready(out)

    # sanity check against plain-JAX reference of the torch forward (eval mode).
    # Tolerance is loosened a bit because the softmax denominator uses the
    # approximate EUP reciprocal (pl.reciprocal(approx=True)).
    R = make_full_R(CONTEXT, D)
    ref = jax.block_until_ready(reference_forward(x, Wq, Wk, Wv, Wo, bo, R))
    if not np.allclose(np.asarray(out), np.asarray(ref), rtol=1e-2, atol=1e-2):
        raise AssertionError("Pallas kernel output mismatch vs reference")

    print("KERNEL_OK")
</pallas_src>

<mosaic_0001>
module attributes {stable_mosaic.version = 11 : i64} {
  func.func @_rope_mha_kernel(%arg0: i32, %arg1: memref<1x8x32xf32, #tpu.memory_space<vmem>>, %arg2: memref<32x384xf32, #tpu.memory_space<vmem>>, %arg3: memref<128x32xf32, #tpu.memory_space<vmem>>, %arg4: memref<1x32xf32, #tpu.memory_space<vmem>>, %arg5: memref<8x128xf32, #tpu.memory_space<vmem>>, %arg6: memref<8x128xf32, #tpu.memory_space<vmem>>, %arg7: memref<8x128xf32, #tpu.memory_space<vmem>>, %arg8: memref<8x8xf32, #tpu.memory_space<vmem>>, %arg9: memref<1x8x32xf32, #tpu.memory_space<vmem>>, %arg10: memref<8x128xf32, #tpu.memory_space<vmem>>) attributes {dimension_semantics = [#tpu.dimension_semantics<parallel>], iteration_bounds = array<i64: 2>, scalar_prefetch = 0 : i64, scratch_operands = 1 : i64, tpu.core_type = #tpu.core_type<tc>, window_params = [{transform_indices = @transform_0, window_bounds = array<i64: 1, 8, 32>}, {pipeline_mode = #tpu.pipeline_mode<synchronous>, transform_indices = @transform_1, window_bounds = array<i64: 32, 384>}, {pipeline_mode = #tpu.pipeline_mode<synchronous>, transform_indices = @transform_2, window_bounds = array<i64: 128, 32>}, {pipeline_mode = #tpu.pipeline_mode<synchronous>, transform_indices = @transform_3, window_bounds = array<i64: 1, 32>}, {pipeline_mode = #tpu.pipeline_mode<synchronous>, transform_indices = @transform_4, window_bounds = array<i64: 8, 128>}, {pipeline_mode = #tpu.pipeline_mode<synchronous>, transform_indices = @transform_5, window_bounds = array<i64: 8, 128>}, {pipeline_mode = #tpu.pipeline_mode<synchronous>, transform_indices = @transform_6, window_bounds = array<i64: 8, 128>}, {pipeline_mode = #tpu.pipeline_mode<synchronous>, transform_indices = @transform_7, window_bounds = array<i64: 8, 8>}, {transform_indices = @transform_8, window_bounds = array<i64: 1, 8, 32>}]} {
    %c0 = arith.constant 0 : index
    %c0_0 = arith.constant 0 : index
    %c0_1 = arith.constant 0 : index
    %0 = vector.load %arg1[%c0, %c0_0, %c0_1] : memref<1x8x32xf32, #tpu.memory_space<vmem>>, vector<1x8x32xf32>
    %1 = vector.shape_cast %0 : vector<1x8x32xf32> to vector<8x32xf32>
    %c0_2 = arith.constant 0 : index
    %c0_3 = arith.constant 0 : index
    %2 = vector.load %arg2[%c0_2, %c0_3] : memref<32x384xf32, #tpu.memory_space<vmem>>, vector<32x384xf32>
    %cst = arith.constant dense<0.000000e+00> : vector<8x384xf32>
    %3 = tpu.matmul %1, %2, %cst {dimension_numbers = #tpu.dot_dimension_numbers<[1], [0], [0], [1], [0, 0, 1, 1], [], []>} : vector<8x32xf32>, vector<32x384xf32>, vector<8x384xf32> -> vector<8x384xf32>
    %4 = vector.extract_strided_slice %3 {offsets = [0, 0], sizes = [8, 128], strides = [1, 1]} : vector<8x384xf32> to vector<8x128xf32>
    %5 = vector.extract_strided_slice %3 {offsets = [0, 128], sizes = [8, 128], strides = [1, 1]} : vector<8x384xf32> to vector<8x128xf32>
    %6 = vector.extract_strided_slice %3 {offsets = [0, 256], sizes = [8, 128], strides = [1, 1]} : vector<8x384xf32> to vector<8x128xf32>
    %c0_4 = arith.constant 0 : index
    %c0_5 = arith.constant 0 : index
    %7 = vector.load %arg5[%c0_4, %c0_5] : memref<8x128xf32, #tpu.memory_space<vmem>>, vector<8x128xf32>
    %c0_6 = arith.constant 0 : index
    %c0_7 = arith.constant 0 : index
    %8 = vector.load %arg6[%c0_6, %c0_7] : memref<8x128xf32, #tpu.memory_space<vmem>>, vector<8x128xf32>
    %c0_8 = arith.constant 0 : index
    %c0_9 = arith.constant 0 : index
    %9 = vector.load %arg7[%c0_8, %c0_9] : memref<8x128xf32, #tpu.memory_space<vmem>>, vector<8x128xf32>
    %c127_i32 = arith.constant 127 : i32
    %10 = tpu.dynamic_rotate %4 by %c127_i32 dim 1 : vector<8x128xf32>, i32 -> vector<8x128xf32>
    %c1_i32 = arith.constant 1 : i32
    %11 = tpu.dynamic_rotate %4 by %c1_i32 dim 1 : vector<8x128xf32>, i32 -> vector<8x128xf32>
    %12 = arith.mulf %4, %7 : vector<8x128xf32>
    %13 = arith.mulf %10, %8 : vector<8x128xf32>
    %14 = arith.addf %12, %13 : vector<8x128xf32>
    %15 = arith.mulf %11, %9 : vector<8x128xf32>
    %16 = arith.addf %14, %15 : vector<8x128xf32>
    %c127_i32_10 = arith.constant 127 : i32
    %17 = tpu.dynamic_rotate %5 by %c127_i32_10 dim 1 : vector<8x128xf32>, i32 -> vector<8x128xf32>
    %c1_i32_11 = arith.constant 1 : i32
    %18 = tpu.dynamic_rotate %5 by %c1_i32_11 dim 1 : vector<8x128xf32>, i32 -> vector<8x128xf32>
    %19 = arith.mulf %5, %7 : vector<8x128xf32>
    %20 = arith.mulf %17, %8 : vector<8x128xf32>
    %21 = arith.addf %19, %20 : vector<8x128xf32>
    %22 = arith.mulf %18, %9 : vector<8x128xf32>
    %23 = arith.addf %21, %22 : vector<8x128xf32>
    %c0_12 = arith.constant 0 : index
    %c0_13 = arith.constant 0 : index
    %24 = vector.load %arg8[%c0_12, %c0_13] : memref<8x8xf32, #tpu.memory_space<vmem>>, vector<8x8xf32>
    %25 = vector.extract_strided_slice %16 {offsets = [0, 0], sizes = [8, 32], strides = [1, 1]} : vector<8x128xf32> to vector<8x32xf32>
    %26 = vector.extract_strided_slice %23 {offsets = [0, 0], sizes = [8, 32], strides = [1, 1]} : vector<8x128xf32> to vector<8x32xf32>
    %27 = vector.extract_strided_slice %6 {offsets = [0, 0], sizes = [8, 32], strides = [1, 1]} : vector<8x128xf32> to vector<8x32xf32>
    %cst_14 = arith.constant dense<0.000000e+00> : vector<8x8xf32>
    %28 = tpu.matmul %25, %26, %cst_14 {dimension_numbers = #tpu.dot_dimension_numbers<[1], [1], [0], [0], [0, 0, 1, 0], [], []>} : vector<8x32xf32>, vector<8x32xf32>, vector<8x8xf32> -> vector<8x8xf32>
    %cst_15 = arith.constant 0.176776692 : f32
    %29 = vector.broadcast %cst_15 : f32 to vector<8x8xf32>
    %30 = arith.mulf %28, %29 : vector<8x8xf32>
    %31 = arith.addf %30, %24 : vector<8x8xf32>
    %cst_16 = arith.constant dense<0xFF800000> : vector<8xf32>
    %32 = vector.multi_reduction <maximumf>, %31, %cst_16 [1] : vector<8x8xf32> to vector<8xf32>
    %33 = vector.shape_cast %32 : vector<8xf32> to vector<8x1xf32>
    %34 = vector.broadcast %33 : vector<8x1xf32> to vector<8x8xf32>
    %35 = arith.subf %31, %34 : vector<8x8xf32>
    %36 = math.exp %35 : vector<8x8xf32>
    %cst_17 = arith.constant dense<0.000000e+00> : vector<8xf32>
    %37 = vector.multi_reduction <add>, %36, %cst_17 [1] : vector<8x8xf32> to vector<8xf32>
    %38 = vector.shape_cast %37 : vector<8xf32> to vector<8x1xf32>
    %39 = tpu.reciprocal %38 {approx = true} : vector<8x1xf32> -> vector<8x1xf32>
    %40 = vector.broadcast %39 : vector<8x1xf32> to vector<8x8xf32>
    %41 = arith.mulf %36, %40 : vector<8x8xf32>
    %cst_18 = arith.constant dense<0.000000e+00> : vector<8x32xf32>
    %42 = tpu.matmul %41, %27, %cst_18 {dimension_numbers = #tpu.dot_dimension_numbers<[1], [0], [0], [1], [0, 0, 1, 1], [], []>} : vector<8x8xf32>, vector<8x32xf32>, vector<8x32xf32> -> vector<8x32xf32>
    %c0_19 = arith.constant 0 : index
    %c0_20 = arith.constant 0 : index
    %43 = vector.load %arg10[%c0_19, %c0_20] : memref<8x128xf32, #tpu.memory_space<vmem>>, vector<8x32xf32>
    tpu.vector_store %arg10[%c0_19, %c0_20], %42 {strides = array<i32>} : memref<8x128xf32, #tpu.memory_space<vmem>>, vector<8x32xf32>,
    %44 = vector.extract_strided_slice %16 {offsets = [0, 32], sizes = [8, 32], strides = [1, 1]} : vector<8x128xf32> to vector<8x32xf32>
    %45 = vector.extract_strided_slice %23 {offsets = [0, 32], sizes = [8, 32], strides = [1, 1]} : vector<8x128xf32> to vector<8x32xf32>
    %46 = vector.extract_strided_slice %6 {offsets = [0, 32], sizes = [8, 32], strides = [1, 1]} : vector<8x128xf32> to vector<8x32xf32>
    %cst_21 = arith.constant dense<0.000000e+00> : vector<8x8xf32>
    %47 = tpu.matmul %44, %45, %cst_21 {dimension_numbers = #tpu.dot_dimension_numbers<[1], [1], [0], [0], [0, 0, 1, 0], [], []>} : vector<8x32xf32>, vector<8x32xf32>, vector<8x8xf32> -> vector<8x8xf32>
    %cst_22 = arith.constant 0.176776692 : f32
    %48 = vector.broadcast %cst_22 : f32 to vector<8x8xf32>
    %49 = arith.mulf %47, %48 : vector<8x8xf32>
    %50 = arith.addf %49, %24 : vector<8x8xf32>
    %cst_23 = arith.constant dense<0xFF800000> : vector<8xf32>
    %51 = vector.multi_reduction <maximumf>, %50, %cst_23 [1] : vector<8x8xf32> to vector<8xf32>
    %52 = vector.shape_cast %51 : vector<8xf32> to vector<8x1xf32>
    %53 = vector.broadcast %52 : vector<8x1xf32> to vector<8x8xf32>
    %54 = arith.subf %50, %53 : vector<8x8xf32>
    %55 = math.exp %54 : vector<8x8xf32>
    %cst_24 = arith.constant dense<0.000000e+00> : vector<8xf32>
    %56 = vector.multi_reduction <add>, %55, %cst_24 [1] : vector<8x8xf32> to vector<8xf32>
    %57 = vector.shape_cast %56 : vector<8xf32> to vector<8x1xf32>
    %58 = tpu.reciprocal %57 {approx = true} : vector<8x1xf32> -> vector<8x1xf32>
    %59 = vector.broadcast %58 : vector<8x1xf32> to vector<8x8xf32>
    %60 = arith.mulf %55, %59 : vector<8x8xf32>
    %cst_25 = arith.constant dense<0.000000e+00> : vector<8x32xf32>
    %61 = tpu.matmul %60, %46, %cst_25 {dimension_numbers = #tpu.dot_dimension_numbers<[1], [0], [0], [1], [0, 0, 1, 1], [], []>} : vector<8x8xf32>, vector<8x32xf32>, vector<8x32xf32> -> vector<8x32xf32>
    %c0_26 = arith.constant 0 : index
    %c32 = arith.constant 32 : index
    %62 = vector.load %arg10[%c0_26, %c32] : memref<8x128xf32, #tpu.memory_space<vmem>>, vector<8x32xf32>
    tpu.vector_store %arg10[%c0_26, %c32], %61 {strides = array<i32>} : memref<8x128xf32, #tpu.memory_space<vmem>>, vector<8x32xf32>,
    %63 = vector.extract_strided_slice %16 {offsets = [0, 64], sizes = [8, 32], strides = [1, 1]} : vector<8x128xf32> to vector<8x32xf32>
    %64 = vector.extract_strided_slice %23 {offsets = [0, 64], sizes = [8, 32], strides = [1, 1]} : vector<8x128xf32> to vector<8x32xf32>
    %65 = vector.extract_strided_slice %6 {offsets = [0, 64], sizes = [8, 32], strides = [1, 1]} : vector<8x128xf32> to vector<8x32xf32>
    %cst_27 = arith.constant dense<0.000000e+00> : vector<8x8xf32>
    %66 = tpu.matmul %63, %64, %cst_27 {dimension_numbers = #tpu.dot_dimension_numbers<[1], [1], [0], [0], [0, 0, 1, 0], [], []>} : vector<8x32xf32>, vector<8x32xf32>, vector<8x8xf32> -> vector<8x8xf32>
    %cst_28 = arith.constant 0.176776692 : f32
    %67 = vector.broadcast %cst_28 : f32 to vector<8x8xf32>
    %68 = arith.mulf %66, %67 : vector<8x8xf32>
    %69 = arith.addf %68, %24 : vector<8x8xf32>
    %cst_29 = arith.constant dense<0xFF800000> : vector<8xf32>
    %70 = vector.multi_reduction <maximumf>, %69, %cst_29 [1] : vector<8x8xf32> to vector<8xf32>
    %71 = vector.shape_cast %70 : vector<8xf32> to vector<8x1xf32>
    %72 = vector.broadcast %71 : vector<8x1xf32> to vector<8x8xf32>
    %73 = arith.subf %69, %72 : vector<8x8xf32>
    %74 = math.exp %73 : vector<8x8xf32>
    %cst_30 = arith.constant dense<0.000000e+00> : vector<8xf32>
    %75 = vector.multi_reduction <add>, %74, %cst_30 [1] : vector<8x8xf32> to vector<8xf32>
    %76 = vector.shape_cast %75 : vector<8xf32> to vector<8x1xf32>
    %77 = tpu.reciprocal %76 {approx = true} : vector<8x1xf32> -> vector<8x1xf32>
    %78 = vector.broadcast %77 : vector<8x1xf32> to vector<8x8xf32>
    %79 = arith.mulf %74, %78 : vector<8x8xf32>
    %cst_31 = arith.constant dense<0.000000e+00> : vector<8x32xf32>
    %80 = tpu.matmul %79, %65, %cst_31 {dimension_numbers = #tpu.dot_dimension_numbers<[1], [0], [0], [1], [0, 0, 1, 1], [], []>} : vector<8x8xf32>, vector<8x32xf32>, vector<8x32xf32> -> vector<8x32xf32>
    %c0_32 = arith.constant 0 : index
    %c64 = arith.constant 64 : index
    %81 = vector.load %arg10[%c0_32, %c64] : memref<8x128xf32, #tpu.memory_space<vmem>>, vector<8x32xf32>
    tpu.vector_store %arg10[%c0_32, %c64], %80 {strides = array<i32>} : memref<8x128xf32, #tpu.memory_space<vmem>>, vector<8x32xf32>,
    %82 = vector.extract_strided_slice %16 {offsets = [0, 96], sizes = [8, 32], strides = [1, 1]} : vector<8x128xf32> to vector<8x32xf32>
    %83 = vector.extract_strided_slice %23 {offsets = [0, 96], sizes = [8, 32], strides = [1, 1]} : vector<8x128xf32> to vector<8x32xf32>
    %84 = vector.extract_strided_slice %6 {offsets = [0, 96], sizes = [8, 32], strides = [1, 1]} : vector<8x128xf32> to vector<8x32xf32>
    %cst_33 = arith.constant dense<0.000000e+00> : vector<8x8xf32>
    %85 = tpu.matmul %82, %83, %cst_33 {dimension_numbers = #tpu.dot_dimension_numbers<[1], [1], [0], [0], [0, 0, 1, 0], [], []>} : vector<8x32xf32>, vector<8x32xf32>, vector<8x8xf32> -> vector<8x8xf32>
    %cst_34 = arith.constant 0.176776692 : f32
    %86 = vector.broadcast %cst_34 : f32 to vector<8x8xf32>
    %87 = arith.mulf %85, %86 : vector<8x8xf32>
    %88 = arith.addf %87, %24 : vector<8x8xf32>
    %cst_35 = arith.constant dense<0xFF800000> : vector<8xf32>
    %89 = vector.multi_reduction <maximumf>, %88, %cst_35 [1] : vector<8x8xf32> to vector<8xf32>
    %90 = vector.shape_cast %89 : vector<8xf32> to vector<8x1xf32>
    %91 = vector.broadcast %90 : vector<8x1xf32> to vector<8x8xf32>
    %92 = arith.subf %88, %91 : vector<8x8xf32>
    %93 = math.exp %92 : vector<8x8xf32>
    %cst_36 = arith.constant dense<0.000000e+00> : vector<8xf32>
    %94 = vector.multi_reduction <add>, %93, %cst_36 [1] : vector<8x8xf32> to vector<8xf32>
    %95 = vector.shape_cast %94 : vector<8xf32> to vector<8x1xf32>
    %96 = tpu.reciprocal %95 {approx = true} : vector<8x1xf32> -> vector<8x1xf32>
    %97 = vector.broadcast %96 : vector<8x1xf32> to vector<8x8xf32>
    %98 = arith.mulf %93, %97 : vector<8x8xf32>
    %cst_37 = arith.constant dense<0.000000e+00> : vector<8x32xf32>
    %99 = tpu.matmul %98, %84, %cst_37 {dimension_numbers = #tpu.dot_dimension_numbers<[1], [0], [0], [1], [0, 0, 1, 1], [], []>} : vector<8x8xf32>, vector<8x32xf32>, vector<8x32xf32> -> vector<8x32xf32>
    %c0_38 = arith.constant 0 : index
    %c96 = arith.constant 96 : index
    %100 = vector.load %arg10[%c0_38, %c96] : memref<8x128xf32, #tpu.memory_space<vmem>>, vector<8x32xf32>
    tpu.vector_store %arg10[%c0_38, %c96], %99 {strides = array<i32>} : memref<8x128xf32, #tpu.memory_space<vmem>>, vector<8x32xf32>,
    %c0_39 = arith.constant 0 : index
    %c0_40 = arith.constant 0 : index
    %101 = vector.load %arg10[%c0_39, %c0_40] : memref<8x128xf32, #tpu.memory_space<vmem>>, vector<8x128xf32>
    %c0_41 = arith.constant 0 : index
    %c0_42 = arith.constant 0 : index
    %102 = vector.load %arg3[%c0_41, %c0_42] : memref<128x32xf32, #tpu.memory_space<vmem>>, vector<128x32xf32>
    %cst_43 = arith.constant dense<0.000000e+00> : vector<8x32xf32>
    %103 = tpu.matmul %101, %102, %cst_43 {dimension_numbers = #tpu.dot_dimension_numbers<[1], [0], [0], [1], [0, 0, 1, 1], [], []>} : vector<8x128xf32>, vector<128x32xf32>, vector<8x32xf32> -> vector<8x32xf32>
    %c0_44 = arith.constant 0 : index
    %c0_45 = arith.constant 0 : index
    %104 = vector.load %arg4[%c0_44, %c0_45] : memref<1x32xf32, #tpu.memory_space<vmem>>, vector<1x32xf32>
    %105 = vector.broadcast %104 : vector<1x32xf32> to vector<8x32xf32>
    %106 = arith.addf %103, %105 : vector<8x32xf32>
    %c0_46 = arith.constant 0 : index
    %c0_47 = arith.constant 0 : index
    %c0_48 = arith.constant 0 : index
    %107 = vector.load %arg9[%c0_46, %c0_47, %c0_48] : memref<1x8x32xf32, #tpu.memory_space<vmem>>, vector<1x8x32xf32>
    %108 = vector.shape_cast %107 : vector<1x8x32xf32> to vector<8x32xf32>
    %109 = vector.shape_cast %106 : vector<8x32xf32> to vector<1x8x32xf32>
    tpu.vector_store %arg9[%c0_46, %c0_47, %c0_48], %109 {strides = array<i32>} : memref<1x8x32xf32, #tpu.memory_space<vmem>>, vector<1x8x32xf32>,
    return
  }
  func.func @transform_0(%arg0: i32) -> (i32, i32, i32) {
    %c0_i32 = arith.constant 0 : i32
    %c0_i32_0 = arith.constant 0 : i32
    %c0_i32_1 = arith.constant 0 : i32
    return %arg0, %c0_i32, %c0_i32_0 : i32, i32, i32
  }
  func.func @transform_1(%arg0: i32) -> (i32, i32) {
    %c0_i32 = arith.constant 0 : i32
    %c0_i32_0 = arith.constant 0 : i32
    %c0_i32_1 = arith.constant 0 : i32
    return %c0_i32, %c0_i32_0 : i32, i32
  }
  func.func @transform_2(%arg0: i32) -> (i32, i32) {
    %c0_i32 = arith.constant 0 : i32
    %c0_i32_0 = arith.constant 0 : i32
    %c0_i32_1 = arith.constant 0 : i32
    return %c0_i32, %c0_i32_0 : i32, i32
  }
  func.func @transform_3(%arg0: i32) -> (i32, i32) {
    %c0_i32 = arith.constant 0 : i32
    %c0_i32_0 = arith.constant 0 : i32
    %c0_i32_1 = arith.constant 0 : i32
    return %c0_i32, %c0_i32_0 : i32, i32
  }
  func.func @transform_4(%arg0: i32) -> (i32, i32) {
    %c0_i32 = arith.constant 0 : i32
    %c0_i32_0 = arith.constant 0 : i32
    %c0_i32_1 = arith.constant 0 : i32
    return %c0_i32, %c0_i32_0 : i32, i32
  }
  func.func @transform_5(%arg0: i32) -> (i32, i32) {
    %c0_i32 = arith.constant 0 : i32
    %c0_i32_0 = arith.constant 0 : i32
    %c0_i32_1 = arith.constant 0 : i32
    return %c0_i32, %c0_i32_0 : i32, i32
  }
  func.func @transform_6(%arg0: i32) -> (i32, i32) {
    %c0_i32 = arith.constant 0 : i32
    %c0_i32_0 = arith.constant 0 : i32
    %c0_i32_1 = arith.constant 0 : i32
    return %c0_i32, %c0_i32_0 : i32, i32
  }
  func.func @transform_7(%arg0: i32) -> (i32, i32) {
    %c0_i32 = arith.constant 0 : i32
    %c0_i32_0 = arith.constant 0 : i32
    %c0_i32_1 = arith.constant 0 : i32
    return %c0_i32, %c0_i32_0 : i32, i32
  }
  func.func @transform_8(%arg0: i32) -> (i32, i32, i32) {
    %c0_i32 = arith.constant 0 : i32
    %c0_i32_0 = arith.constant 0 : i32
    %c0_i32_1 = arith.constant 0 : i32
    return %arg0, %c0_i32, %c0_i32_0 : i32, i32, i32
  }
}

</mosaic_0001>

<llo_original>
// kernel: tpu_custom_call.1
$region0: #{tpu_custom_call.1}
  #allocation0 [shape = 'u32[]', space=smem, size = 0x4, offset = 0x4, fixed_abs, tag = 'smem constant byte address 0x4 - core index']
  #allocation1 [shape = 'u32[144,128]{1,0:T(1,128)}', space=vmem, size = 0x12000, scoped, tag = 'internal scratch']
  #allocation2 [shape = 'f32[8,128]{1,0:T(8,128)}', space=vmem, size = 0x1000, scoped, tag = 'scratch operand']
  %s0 = inlined_call_operand.vmem [shape: f32[2,8,32], index: 0, kind: input, shape index: {}]
  %s1 = inlined_call_operand.vmem [shape: f32[32,384], index: 1, kind: input, shape index: {}]
  %s2 = inlined_call_operand.vmem [shape: f32[128,32], index: 2, kind: input, shape index: {}]
  %s3 = inlined_call_operand.vmem [shape: f32[1,32], index: 3, kind: input, shape index: {}]
  %s4 = inlined_call_operand.vmem [shape: f32[8,128], index: 4, kind: input, shape index: {}]
  %s5 = inlined_call_operand.vmem [shape: f32[8,128], index: 5, kind: input, shape index: {}]
  %s6 = inlined_call_operand.vmem [shape: f32[8,128], index: 6, kind: input, shape index: {}]
  %s7 = inlined_call_operand.vmem [shape: f32[8,8], index: 7, kind: input, shape index: {}]
  %s8 = inlined_call_operand.hbm [shape: f32[2,8,32], index: 8, kind: output, shape index: {}]
  %s9 = sld [smem:[#allocation0]]
  $region65: #{tpu_custom_call.1} parent=0
    _
  %s11 = ssub.s32 1, %s9
  %s12 = scalar_select 0, %s11, %s9
  $region1: #{tpu_custom_call.1} parent=0
    #allocation3 [shape = 'u8[8192]{0}', space=vmem, size = 0x2000, scoped, tag = 'output window, operand 0']
    #allocation4 [shape = 's32[2]{0}', space=sflag, size = 0x8, scoped, tag = 'scoped memory for tpu_custom_call.1']
    %13 = vsyncpa [#allocation4], 0
    %s14 = scalar_lea.sflag [#allocation4], 1
    %15 = vsyncpa %s14, 0
    loop: start=0, step=1, limit=4
    $region2: #{tpu_custom_call.1} parent=1 // loop_pre_header
      _
    $region3: #{tpu_custom_call.1} parent=1 // loop_header
      %s17 = sphi 0, %s21
      %p18 = scmp.ge.s32.totalorder %s17, 4
      %s27 = sphi 0, %s29
      %s30 = sphi 0, %s27
      %s31 = sphi 0, %s30
      %s47 = sphi 0, %s31
      %s51 = sphi 0, %s51
      %s53 = sphi 0, %s51
      %s54 = sphi 0, %s53
      %s68 = sphi 0, %s54
      %s72 = sphi 0, %s72
      %s74 = sphi 0, %s72
      %s75 = sphi 0, %s74
      %s89 = sphi 0, %s75
      %s93 = sphi 0, %s93
      %s95 = sphi 0, %s93
      %s96 = sphi 0, %s95
      %s110 = sphi 0, %s96
      %s114 = sphi 0, %s114
      %s116 = sphi 0, %s114
      %s117 = sphi 0, %s116
      %s131 = sphi 0, %s117
      %s135 = sphi 0, %s135
      %s137 = sphi 0, %s135
      %s138 = sphi 0, %s137
      %s152 = sphi 0, %s138
      %s156 = sphi 0, %s156
      %s158 = sphi 0, %s156
      %s159 = sphi 0, %s158
      %s173 = sphi 0, %s159
      %s177 = sphi 0, %s177
      %s179 = sphi 0, %s177
      %s180 = sphi 0, %s179
      %s194 = sphi 0, %s180
      %s200 = sphi 0, %s202
      %s203 = sphi 0, %s200
      %s204 = sphi 0, %s203
      %s220 = sphi 0, %s204
    $region4: #{tpu_custom_call.1} parent=1 // loop_header_branch
      %20 = sbr.rel (%p18) target = $region8
    $region5: #{tpu_custom_call.1} parent=1 // loop_body
      %s22 = ssub.s32 %s17, 1
      %s23 = ssub.s32 %s17, 2
      %s24 = sadd.s32 %s17, 1
      %s25 = ssub.s32 %s17, %s24
      %p26 = scmp.eq.s32.totalorder %s25, 0
      %s28 = sadd.s32 %s27, 1
      %s29 = scalar_select %p26, %s27, %s28
      %p32 = pneg %p26
      %p33 = scmp.eq.s32.totalorder %s17, 1
      %p34 = por %p32, %p33
      %p35 = scmp.ne.s32.totalorder %s27, %s30
      %p36 = scmp.eq.s32.totalorder %s17, 0
      %p37 = por %p35, %p36
      %p38 = scmp.ne.s32.totalorder %s27, %s30
      %p39 = scmp.eq.s32.totalorder %s22, 1
      %p40 = por %p38, %p39
      %p41 = scmp.ne.s32.totalorder %s30, %s31
      %p42 = scmp.eq.s32.totalorder %s22, 0
      %p43 = por %p41, %p42
      %p44 = scmp.ne.s32.totalorder %s30, %s31
      %p45 = scmp.eq.s32.totalorder %s23, 1
      %p46 = por %p44, %p45
      %p48 = scmp.ne.s32.totalorder %s31, %s47
      %p49 = scmp.eq.s32.totalorder %s23, 0
      %p50 = por %p48, %p49
      %s52 = sadd.s32 %s51, 1
      %p55 = scmp.eq.s32.totalorder %s17, 1
      %p56 = scmp.ne.s32.totalorder %s51, %s53
      %p57 = scmp.eq.s32.totalorder %s17, 0
      %p58 = por %p56, %p57
      %p59 = scmp.ne.s32.totalorder %s51, %s53
      %p60 = scmp.eq.s32.totalorder %s22, 1
      %p61 = por %p59, %p60
      %p62 = scmp.ne.s32.totalorder %s53, %s54
      %p63 = scmp.eq.s32.totalorder %s22, 0
      %p64 = por %p62, %p63
      %p65 = scmp.ne.s32.totalorder %s53, %s54
      %p66 = scmp.eq.s32.totalorder %s23, 1
      %p67 = por %p65, %p66
      %p69 = scmp.ne.s32.totalorder %s54, %s68
      %p70 = scmp.eq.s32.totalorder %s23, 0
      %p71 = por %p69, %p70
      %s73 = sadd.s32 %s72, 1
      %p76 = scmp.eq.s32.totalorder %s17, 1
      %p77 = scmp.ne.s32.totalorder %s72, %s74
      %p78 = scmp.eq.s32.totalorder %s17, 0
      %p79 = por %p77, %p78
      %p80 = scmp.ne.s32.totalorder %s72, %s74
      %p81 = scmp.eq.s32.totalorder %s22, 1
      %p82 = por %p80, %p81
      %p83 = scmp.ne.s32.totalorder %s74, %s75
      %p84 = scmp.eq.s32.totalorder %s22, 0
      %p85 = por %p83, %p84
      %p86 = scmp.ne.s32.totalorder %s74, %s75
      %p87 = scmp.eq.s32.totalorder %s23, 1
      %p88 = por %p86, %p87
      %p90 = scmp.ne.s32.totalorder %s75, %s89
      %p91 = scmp.eq.s32.totalorder %s23, 0
      %p92 = por %p90, %p91
      %s94 = sadd.s32 %s93, 1
      %p97 = scmp.eq.s32.totalorder %s17, 1
      %p98 = scmp.ne.s32.totalorder %s93, %s95
      %p99 = scmp.eq.s32.totalorder %s17, 0
      %p100 = por %p98, %p99
      %p101 = scmp.ne.s32.totalorder %s93, %s95
      %p102 = scmp.eq.s32.totalorder %s22, 1
      %p103 = por %p101, %p102
      %p104 = scmp.ne.s32.totalorder %s95, %s96
      %p105 = scmp.eq.s32.totalorder %s22, 0
      %p106 = por %p104, %p105
      %p107 = scmp.ne.s32.totalorder %s95, %s96
      %p108 = scmp.eq.s32.totalorder %s23, 1
      %p109 = por %p107, %p108
      %p111 = scmp.ne.s32.totalorder %s96, %s110
      %p112 = scmp.eq.s32.totalorder %s23, 0
      %p113 = por %p111, %p112
      %s115 = sadd.s32 %s114, 1
      %p118 = scmp.eq.s32.totalorder %s17, 1
      %p119 = scmp.ne.s32.totalorder %s114, %s116
      %p120 = scmp.eq.s32.totalorder %s17, 0
      %p121 = por %p119, %p120
      %p122 = scmp.ne.s32.totalorder %s114, %s116
      %p123 = scmp.eq.s32.totalorder %s22, 1
      %p124 = por %p122, %p123
      %p125 = scmp.ne.s32.totalorder %s116, %s117
      %p126 = scmp.eq.s32.totalorder %s22, 0
      %p127 = por %p125, %p126
      %p128 = scmp.ne.s32.totalorder %s116, %s117
      %p129 = scmp.eq.s32.totalorder %s23, 1
      %p130 = por %p128, %p129
      %p132 = scmp.ne.s32.totalorder %s117, %s131
      %p133 = scmp.eq.s32.totalorder %s23, 0
      %p134 = por %p132, %p133
      %s136 = sadd.s32 %s135, 1
      %p139 = scmp.eq.s32.totalorder %s17, 1
      %p140 = scmp.ne.s32.totalorder %s135, %s137
      %p141 = scmp.eq.s32.totalorder %s17, 0
      %p142 = por %p140, %p141
      %p143 = scmp.ne.s32.totalorder %s135, %s137
      %p144 = scmp.eq.s32.totalorder %s22, 1
      %p145 = por %p143, %p144
      %p146 = scmp.ne.s32.totalorder %s137, %s138
      %p147 = scmp.eq.s32.totalorder %s22, 0
      %p148 = por %p146, %p147
      %p149 = scmp.ne.s32.totalorder %s137, %s138
      %p150 = scmp.eq.s32.totalorder %s23, 1
      %p151 = por %p149, %p150
      %p153 = scmp.ne.s32.totalorder %s138, %s152
      %p154 = scmp.eq.s32.totalorder %s23, 0
      %p155 = por %p153, %p154
      %s157 = sadd.s32 %s156, 1
      %p160 = scmp.eq.s32.totalorder %s17, 1
      %p161 = scmp.ne.s32.totalorder %s156, %s158
      %p162 = scmp.eq.s32.totalorder %s17, 0
      %p163 = por %p161, %p162
      %p164 = scmp.ne.s32.totalorder %s156, %s158
      %p165 = scmp.eq.s32.totalorder %s22, 1
      %p166 = por %p164, %p165
      %p167 = scmp.ne.s32.totalorder %s158, %s159
      %p168 = scmp.eq.s32.totalorder %s22, 0
      %p169 = por %p167, %p168
      %p170 = scmp.ne.s32.totalorder %s158, %s159
      %p171 = scmp.eq.s32.totalorder %s23, 1
      %p172 = por %p170, %p171
      %p174 = scmp.ne.s32.totalorder %s159, %s173
      %p175 = scmp.eq.s32.totalorder %s23, 0
      %p176 = por %p174, %p175
      %s178 = sadd.s32 %s177, 1
      %p181 = scmp.eq.s32.totalorder %s17, 1
      %p182 = scmp.ne.s32.totalorder %s177, %s179
      %p183 = scmp.eq.s32.totalorder %s17, 0
      %p184 = por %p182, %p183
      %p185 = scmp.ne.s32.totalorder %s177, %s179
      %p186 = scmp.eq.s32.totalorder %s22, 1
      %p187 = por %p185, %p186
      %p188 = scmp.ne.s32.totalorder %s179, %s180
      %p189 = scmp.eq.s32.totalorder %s22, 0
      %p190 = por %p188, %p189
      %p191 = scmp.ne.s32.totalorder %s179, %s180
      %p192 = scmp.eq.s32.totalorder %s23, 1
      %p193 = por %p191, %p192
      %p195 = scmp.ne.s32.totalorder %s180, %s194
      %p196 = scmp.eq.s32.totalorder %s23, 0
      %p197 = por %p195, %p196
      %s198 = ssub.s32 %s17, %s24
      %p199 = scmp.eq.s32.totalorder %s198, 0
      %s201 = sadd.s32 %s200, 1
      %s202 = scalar_select %p199, %s200, %s201
      %p205 = pneg %p199
      %p206 = scmp.eq.s32.totalorder %s17, 1
      %p207 = por %p205, %p206
      %p208 = scmp.ne.s32.totalorder %s200, %s203
      %p209 = scmp.eq.s32.totalorder %s17, 0
      %p210 = por %p208, %p209
      %p211 = scmp.ne.s32.totalorder %s200, %s203
      %p212 = scmp.eq.s32.totalorder %s22, 1
      %p213 = por %p211, %p212
      %p214 = scmp.ne.s32.totalorder %s203, %s204
      %p215 = scmp.eq.s32.totalorder %s22, 0
      %p216 = por %p214, %p215
      %p217 = scmp.ne.s32.totalorder %s203, %s204
      %p218 = scmp.eq.s32.totalorder %s23, 1
      %p219 = por %p217, %p218
      %p221 = scmp.ne.s32.totalorder %s204, %s220
      %p222 = scmp.eq.s32.totalorder %s23, 0
      %p223 = por %p221, %p222
      %p224 = scmp.le.s32.totalorder 1, %s17
      %p225 = scmp.lt.s32.totalorder %s17, 3
      %p226 = pnand %p224, %p225
      %p227 = pneg %p226
      // Predicated region
      $region9: #{tpu_custom_call.1} parent=5 // pred_check
        _
      $region10: #{tpu_custom_call.1} parent=5 // pred_check_branch
        %229 = sbr.rel (%p226) target = $region12
      $region11: #{tpu_custom_call.1} parent=5 // pred_region
        %s230 = ssub.s32 %s17, 1
        // Predicated region
        $region13: #{tpu_custom_call.1} parent=11 // pred_check
          %p231 = pneg %p64
        $region14: #{tpu_custom_call.1} parent=11 // pred_check_branch
          %233 = sbr.rel (%p231) target = $region16
        $region15: #{tpu_custom_call.1} parent=11 // pred_region
          _
        $region16: #{tpu_custom_call.1} parent=11 // pred_fallthru
          _
        // Predicated region
        $region17: #{tpu_custom_call.1} parent=11 // pred_check
          %p234 = pneg %p85
        $region18: #{tpu_custom_call.1} parent=11 // pred_check_branch
          %236 = sbr.rel (%p234) target = $region20
        $region19: #{tpu_custom_call.1} parent=11 // pred_region
          _
        $region20: #{tpu_custom_call.1} parent=11 // pred_fallthru
          _
        // Predicated region
        $region21: #{tpu_custom_call.1} parent=11 // pred_check
          %p237 = pneg %p106
        $region22: #{tpu_custom_call.1} parent=11 // pred_check_branch
          %239 = sbr.rel (%p237) target = $region24
        $region23: #{tpu_custom_call.1} parent=11 // pred_region
          _
        $region24: #{tpu_custom_call.1} parent=11 // pred_fallthru
          _
        // Predicated region
        $region25: #{tpu_custom_call.1} parent=11 // pred_check
          %p240 = pneg %p127
        $region26: #{tpu_custom_call.1} parent=11 // pred_check_branch
          %242 = sbr.rel (%p240) target = $region28
        $region27: #{tpu_custom_call.1} parent=11 // pred_region
          _
        $region28: #{tpu_custom_call.1} parent=11 // pred_fallthru
          _
        // Predicated region
        $region29: #{tpu_custom_call.1} parent=11 // pred_check
          %p243 = pneg %p148
        $region30: #{tpu_custom_call.1} parent=11 // pred_check_branch
          %245 = sbr.rel (%p243) target = $region32
        $region31: #{tpu_custom_call.1} parent=11 // pred_region
          _
        $region32: #{tpu_custom_call.1} parent=11 // pred_fallthru
          _
        // Predicated region
        $region33: #{tpu_custom_call.1} parent=11 // pred_check
          %p246 = pneg %p169
        $region34: #{tpu_custom_call.1} parent=11 // pred_check_branch
          %248 = sbr.rel (%p246) target = $region36
        $region35: #{tpu_custom_call.1} parent=11 // pred_region
          _
        $region36: #{tpu_custom_call.1} parent=11 // pred_fallthru
          _
        // Predicated region
        $region37: #{tpu_custom_call.1} parent=11 // pred_check
          %p249 = pneg %p190
        $region38: #{tpu_custom_call.1} parent=11 // pred_check_branch
          %251 = sbr.rel (%p249) target = $region40
        $region39: #{tpu_custom_call.1} parent=11 // pred_region
          _
        $region40: #{tpu_custom_call.1} parent=11 // pred_fallthru
          _
      $region12: #{tpu_custom_call.1} parent=5 // pred_fallthru
        _
      %p252 = scmp.lt.s32.totalorder %s17, 2
      // Predicated region
      $region41: #{tpu_custom_call.1} parent=5 // pred_check
        %p253 = pneg %p252
      $region42: #{tpu_custom_call.1} parent=5 // pred_check_branch
        %255 = sbr.rel (%p253) target = $region44
      $region43: #{tpu_custom_call.1} parent=5 // pred_region
        // Predicated region
        $region45: #{tpu_custom_call.1} parent=43 // pred_check
          %p256 = pneg %p37
        $region46: #{tpu_custom_call.1} parent=43 // pred_check_branch
          %258 = sbr.rel (%p256) target = $region48
        $region47: #{tpu_custom_call.1} parent=43 // pred_region
          %p259 = scmp.lt.s32.totalorder %s17, 1
          %s260 = scalar_select %p259, %s17, 1
          %s261 = smul.addr %s260, 8
          %s262 = scalar_lea.vmem %s0, %s261
        $region48: #{tpu_custom_call.1} parent=43 // pred_fallthru
          _
      $region44: #{tpu_custom_call.1} parent=5 // pred_fallthru
        _
      %p263 = scmp.le.s32.totalorder 1, %s17
      %p264 = scmp.lt.s32.totalorder %s17, 3
      %p265 = pnand %p263, %p264
      %p266 = pneg %p265
      // Predicated region
      $region49: #{tpu_custom_call.1} parent=5 // pred_check
        _
      $region50: #{tpu_custom_call.1} parent=5 // pred_check_branch
        %268 = sbr.rel (%p265) target = $region52
      $region51: #{tpu_custom_call.1} parent=5 // pred_region
        %s269 = ssub.s32 %s17, 1
        %p270 = scmp.lt.s32.totalorder %s22, 1
        %s271 = scalar_select %p270, %s22, 1
        %s272 = smul.addr %s271, 8
        %s273 = scalar_lea.vmem %s0, %s272
        %p274 = pneg %p43
        %p275 = pneg %p40
        %p276 = pneg %p64
        %p277 = pneg %p61
        %p278 = pneg %p85
        %p279 = pneg %p82
        %p280 = pneg %p106
        %p281 = pneg %p103
        %p282 = pneg %p127
        %p283 = pneg %p124
        %p284 = pneg %p148
        %p285 = pneg %p145
        %p286 = pneg %p169
        %p287 = pneg %p166
        %p288 = pneg %p190
        %p289 = pneg %p187
        %p290 = pneg %p216
        %p291 = pneg %p213
        %s292 = sand.u32 %s203, 1
        %s293 = scalar_lea.sflag [#allocation4], %s292
        %s294 = sand.u32 %s203, 1
        %s295 = smul.addr %s294, 8
        %s296 = scalar_lea.vmem [#allocation3], %s295
        %p297 = scmp.lt.s32.totalorder %s22, 1
        %s298 = scalar_select %p297, %s22, 1
        %s299 = smul.addr %s298, 8
        %s300 = scalar_lea.vmem %s0, %s299
        %v301 = vld [vmem:[%s300] sm:$0xff]
        %v302 = vld [vmem:[%s1] sm:$0xff]
        %v303 = vld [vmem:[%s1 + $0x8] sm:$0xff]
        %v304 = vld [vmem:[%s1 + $0x10] sm:$0xff]
        %v305 = vld [vmem:[%s1 + $0x18] sm:$0xff]
        %v306 = vld [vmem:[%s1 + $0x20] sm:$0xff]
        %v307 = vld [vmem:[%s1 + $0x28] sm:$0xff]
        %v308 = vld [vmem:[%s1 + $0x30] sm:$0xff]
        %v309 = vld [vmem:[%s1 + $0x38] sm:$0xff]
        %v310 = vld [vmem:[%s1 + $0x40] sm:$0xff]
        %v311 = vld [vmem:[%s1 + $0x48] sm:$0xff]
        %v312 = vld [vmem:[%s1 + $0x50] sm:$0xff]
        %v313 = vld [vmem:[%s1 + $0x58] sm:$0xff]
        %vm314 = vcmask 261120
        %v316 = vsel %vm314, %v301, 0
        %318 = vmatprep.subr.mxu0 0.0
        %319 = vmatpush1.msra.mxu0 0.0
        %320 = vmatprep.subr.mxu0 0.0
        %321 = vmatpush1.msra.mxu0 0.0
        %322 = vmatprep.subr.mxu0 0.0
        %323 = vmatpush1.msra.mxu0 0.0
        %324 = vmatprep.subr.mxu0 0.0
        %325 = vmatpush1.msra.mxu0 0.0
        %326 = vmatprep.subr.mxu0 0.0
        %327 = vmatpush1.msra.mxu0 0.0
        %328 = vmatprep.subr.mxu0 0.0
        %329 = vmatpush1.msra.mxu0 0.0
        %330 = vmatprep.subr.mxu0 0.0
        %331 = vmatpush1.msra.mxu0 0.0
        %332 = vmatprep.subr.mxu0 0.0
        %333 = vmatpush1.msra.mxu0 0.0
        %334 = vmatprep.subr.mxu0 0.0
        %335 = vmatpush1.msra.mxu0 0.0
        %336 = vmatprep.subr.mxu0 0.0
        %337 = vmatpush1.msra.mxu0 0.0
        %338 = vmatprep.subr.mxu0 0.0
        %339 = vmatpush1.msra.mxu0 0.0
        %340 = vmatprep.subr.mxu0 0.0
        %341 = vmatpush1.msra.mxu0 0.0
        %342 = vmatprep.subr.mxu0 %v312
        %343 = vmatpush1.msra.mxu0 %v311
        %344 = vmatprep.subr.mxu0 %v309
        %345 = vmatpush1.msra.mxu0 %v308
        %346 = vmatprep.subr.mxu0 %v306
        %347 = vmatpush1.msra.mxu0 %v305
        %348 = vmatprep.subr.mxu0 %v303
        %349 = vmatpush1.msra.mxu0 %v302
        %350 = vmatprep.subr.mxu0 0.0
        %351 = vmatpush2.msra.mxu0 0.0
        %352 = vmatprep.subr.mxu0 0.0
        %353 = vmatpush2.msra.mxu0 0.0
        %354 = vmatprep.subr.mxu0 0.0
        %355 = vmatpush2.msra.mxu0 0.0
        %356 = vmatprep.subr.mxu0 0.0
        %357 = vmatpush2.msra.mxu0 0.0
        %358 = vmatprep.subr.mxu0 0.0
        %359 = vmatpush2.msra.mxu0 0.0
        %360 = vmatprep.subr.mxu0 0.0
        %361 = vmatpush2.msra.mxu0 0.0
        %362 = vmatprep.subr.mxu0 0.0
        %363 = vmatpush2.msra.mxu0 0.0
        %364 = vmatprep.subr.mxu0 0.0
        %365 = vmatpush2.msra.mxu0 0.0
        %366 = vmatprep.subr.mxu0 0.0
        %367 = vmatpush2.msra.mxu0 0.0
        %368 = vmatprep.subr.mxu0 0.0
        %369 = vmatpush2.msra.mxu0 0.0
        %370 = vmatprep.subr.mxu0 0.0
        %371 = vmatpush2.msra.mxu0 0.0
        %372 = vmatprep.subr.mxu0 0.0
        %373 = vmatpush2.msra.mxu0 0.0
        %374 = vmatprep.subr.mxu0 0.0
        %375 = vmatpush2.msra.mxu0 0.0
        %376 = vmatprep.subr.mxu0 0.0
        %377 = vmatpush2.msra.mxu0 0.0
        %378 = vmatprep.subr.mxu0 0.0
        %379 = vmatpush2.msra.mxu0 0.0
        %380 = vmatprep.subr.mxu0 0.0
        %381 = vmatpush2.msra.mxu0 0.0
        %382 = vmatprep.mubr.f32.mxu0 0.0
        %383 = vmatmul.mubr.f32.gmra.mxu0 %v316
        %v384 = vpop.f32.mrf.mxu0
        %v385 = vadd.f32 0.0, %v384
        %v386 = vpop.f32.mrf.mxu0
        %v387 = vadd.f32 0.0, %v386
        %388 = vdwg.mxu0
        %389 = vmatprep.subr.mxu0 0.0
        %390 = vmatpush1.msra.mxu0 0.0
        %391 = vmatprep.subr.mxu0 0.0
        %392 = vmatpush1.msra.mxu0 0.0
        %393 = vmatprep.subr.mxu0 0.0
        %394 = vmatpush1.msra.mxu0 0.0
        %395 = vmatprep.subr.mxu0 0.0
        %396 = vmatpush1.msra.mxu0 0.0
        %397 = vmatprep.subr.mxu0 0.0
        %398 = vmatpush1.msra.mxu0 0.0
        %399 = vmatprep.subr.mxu0 0.0
        %400 = vmatpush1.msra.mxu0 0.0
        %401 = vmatprep.subr.mxu0 0.0
        %402 = vmatpush1.msra.mxu0 0.0
        %403 = vmatprep.subr.mxu0 0.0
        %404 = vmatpush1.msra.mxu0 0.0
        %405 = vmatprep.subr.mxu0 0.0
        %406 = vmatpush1.msra.mxu0 0.0
        %407 = vmatprep.subr.mxu0 0.0
        %408 = vmatpush1.msra.mxu0 0.0
        %409 = vmatprep.subr.mxu0 0.0
        %410 = vmatpush1.msra.mxu0 0.0
        %411 = vmatprep.subr.mxu0 0.0
        %412 = vmatpush1.msra.mxu0 0.0
        %413 = vmatprep.subr.mxu0 0.0
        %414 = vmatpush1.msra.mxu0 %v313
        %415 = vmatprep.subr.mxu0 0.0
        %416 = vmatpush1.msra.mxu0 %v310
        %417 = vmatprep.subr.mxu0 0.0
        %418 = vmatpush1.msra.mxu0 %v307
        %419 = vmatprep.subr.mxu0 0.0
        %420 = vmatpush1.msra.mxu0 %v304
        %421 = vmatprep.subr.mxu0 0.0
        %422 = vmatpush2.msra.mxu0 0.0
        %423 = vmatprep.subr.mxu0 0.0
        %424 = vmatpush2.msra.mxu0 0.0
        %425 = vmatprep.subr.mxu0 0.0
        %426 = vmatpush2.msra.mxu0 0.0
        %427 = vmatprep.subr.mxu0 0.0
        %428 = vmatpush2.msra.mxu0 0.0
        %429 = vmatprep.subr.mxu0 0.0
        %430 = vmatpush2.msra.mxu0 0.0
        %431 = vmatprep.subr.mxu0 0.0
        %432 = vmatpush2.msra.mxu0 0.0
        %433 = vmatprep.subr.mxu0 0.0
        %434 = vmatpush2.msra.mxu0 0.0
        %435 = vmatprep.subr.mxu0 0.0
        %436 = vmatpush2.msra.mxu0 0.0
        %437 = vmatprep.subr.mxu0 0.0
        %438 = vmatpush2.msra.mxu0 0.0
        %439 = vmatprep.subr.mxu0 0.0
        %440 = vmatpush2.msra.mxu0 0.0
        %441 = vmatprep.subr.mxu0 0.0
        %442 = vmatpush2.msra.mxu0 0.0
        %443 = vmatprep.subr.mxu0 0.0
        %444 = vmatpush2.msra.mxu0 0.0
        %445 = vmatprep.subr.mxu0 0.0
        %446 = vmatpush2.msra.mxu0 0.0
        %447 = vmatprep.subr.mxu0 0.0
        %448 = vmatpush2.msra.mxu0 0.0
        %449 = vmatprep.subr.mxu0 0.0
        %450 = vmatpush2.msra.mxu0 0.0
        %451 = vmatprep.subr.mxu0 0.0
        %452 = vmatpush2.msra.mxu0 0.0
        %453 = vmatprep.mubr.f32.mxu0 0.0
        %454 = vmatmul.mubr.f32.gmra.mxu0 %v316
        %v455 = vpop.f32.mrf.mxu0
        %v456 = vadd.f32 0.0, %v455
        %v457 = vpop.f32.mrf.mxu0
        %458 = vdwg.mxu0
        %v459 = vld [vmem:[%s4] sm:$0xff]
        %v460 = vld [vmem:[%s5] sm:$0xff]
        %v461 = vld [vmem:[%s6] sm:$0xff]
        %462 = vrot.lane.b32.xlu0 %v385, 127
        %v463 = vpop.permute.xlu0 %462
        %464 = vrot.lane.b32.xlu0 %v385, 1
        %v465 = vpop.permute.xlu0 %464
        %v466 = vmul.f32 %v385, %v459
        %v467 = vmul.f32 %v463, %v460
        %v468 = vadd.f32 %v466, %v467
        %v469 = vmul.f32 %v465, %v461
        %v470 = vadd.f32 %v468, %v469
        %471 = vrot.lane.b32.xlu0 %v387, 127
        %v472 = vpop.permute.xlu0 %471
        %473 = vrot.lane.b32.xlu0 %v387, 1
        %v474 = vpop.permute.xlu0 %473
        %v475 = vmul.f32 %v387, %v459
        %v476 = vmul.f32 %v472, %v460
        %v477 = vadd.f32 %v475, %v476
        %v478 = vmul.f32 %v474, %v461
        %v479 = vadd.f32 %v477, %v478
        %v480 = vld [vmem:[%s7] sm:$0xff]
        %v482 = vsel %vm314, %v470, 0
        %v485 = vsel %vm314, %v479, 0
        %487 = vmatprep.subr.mxu0 0.0
        %488 = vmatpush1.xpose.msra.mxu0 0.0
        %489 = vmatprep.subr.mxu0 0.0
        %490 = vmatpush1.xpose.msra.mxu0 0.0
        %491 = vmatprep.subr.mxu0 0.0
        %492 = vmatpush1.xpose.msra.mxu0 0.0
        %493 = vmatprep.subr.mxu0 0.0
        %494 = vmatpush1.xpose.msra.mxu0 0.0
        %495 = vmatprep.subr.mxu0 0.0
        %496 = vmatpush1.xpose.msra.mxu0 0.0
        %497 = vmatprep.subr.mxu0 0.0
        %498 = vmatpush1.xpose.msra.mxu0 0.0
        %499 = vmatprep.subr.mxu0 0.0
        %500 = vmatpush1.xpose.msra.mxu0 0.0
        %501 = vmatprep.subr.mxu0 0.0
        %502 = vmatpush1.xpose.msra.mxu0 0.0
        %503 = vmatprep.subr.mxu0 0.0
        %504 = vmatpush1.xpose.msra.mxu0 0.0
        %505 = vmatprep.subr.mxu0 0.0
        %506 = vmatpush1.xpose.msra.mxu0 0.0
        %507 = vmatprep.subr.mxu0 0.0
        %508 = vmatpush1.xpose.msra.mxu0 0.0
        %509 = vmatprep.subr.mxu0 0.0
        %510 = vmatpush1.xpose.msra.mxu0 0.0
        %511 = vmatprep.subr.mxu0 0.0
        %512 = vmatpush1.xpose.msra.mxu0 0.0
        %513 = vmatprep.subr.mxu0 0.0
        %514 = vmatpush1.xpose.msra.mxu0 0.0
        %515 = vmatprep.subr.mxu0 0.0
        %516 = vmatpush1.xpose.msra.mxu0 0.0
        %517 = vmatprep.subr.mxu0 0.0
        %518 = vmatpush1.xpose.msra.mxu0 %v485
        %519 = vmatprep.subr.mxu0 0.0
        %520 = vmatpush2.xpose.msra.mxu0 0.0
        %521 = vmatprep.subr.mxu0 0.0
        %522 = vmatpush2.xpose.msra.mxu0 0.0
        %523 = vmatprep.subr.mxu0 0.0
        %524 = vmatpush2.xpose.msra.mxu0 0.0
        %525 = vmatprep.subr.mxu0 0.0
        %526 = vmatpush2.xpose.msra.mxu0 0.0
        %527 = vmatprep.subr.mxu0 0.0
        %528 = vmatpush2.xpose.msra.mxu0 0.0
        %529 = vmatprep.subr.mxu0 0.0
        %530 = vmatpush2.xpose.msra.mxu0 0.0
        %531 = vmatprep.subr.mxu0 0.0
        %532 = vmatpush2.xpose.msra.mxu0 0.0
        %533 = vmatprep.subr.mxu0 0.0
        %534 = vmatpush2.xpose.msra.mxu0 0.0
        %535 = vmatprep.subr.mxu0 0.0
        %536 = vmatpush2.xpose.msra.mxu0 0.0
        %537 = vmatprep.subr.mxu0 0.0
        %538 = vmatpush2.xpose.msra.mxu0 0.0
        %539 = vmatprep.subr.mxu0 0.0
        %540 = vmatpush2.xpose.msra.mxu0 0.0
        %541 = vmatprep.subr.mxu0 0.0
        %542 = vmatpush2.xpose.msra.mxu0 0.0
        %543 = vmatprep.subr.mxu0 0.0
        %544 = vmatpush2.xpose.msra.mxu0 0.0
        %545 = vmatprep.subr.mxu0 0.0
        %546 = vmatpush2.xpose.msra.mxu0 0.0
        %547 = vmatprep.subr.mxu0 0.0
        %548 = vmatpush2.xpose.msra.mxu0 0.0
        %549 = vmatprep.subr.mxu0 0.0
        %550 = vmatpush2.xpose.msra.mxu0 0.0
        %551 = vmatprep.mubr.f32.mxu0 0.0
        %552 = vmatmul.mubr.f32.gmra.mxu0 %v482
        %v553 = vpop.f32.mrf.mxu0
        %v554 = vadd.f32 0.0, %v553
        %v555 = vpop.f32.mrf.mxu0
        %556 = vdwg.mxu0
        %v557 = vmul.f32 %v554, 0.17677669
        %v558 = vadd.f32 %v557, %v480
        %vm559 = vcmask 64512
        %v560 = vsel %vm559, %v558, -inf
        %561 = vmax.xlane.f32.xlu0 %v560
        %v562 = vpop.xlane.xlu0 %561
        %v563 = vsub.f32 %v558, %v562
        %v564 = vmul.f32 %v563, 1.442695
        %v565 = vpow.pop %v564
        %v566 = vsel %vm559, %v565, 0.0
        %567 = vadd.xlane.f32.xlu0 %v566
        %v568 = vpop.xlane.xlu0 %567
        %v569 = vrcp.pop %v568
        %v570 = vmul.f32 %v565, %v569
        %v572 = vsel %vm559, %v570, 0
        %574 = vmatprep.subr.mxu0 0.0
        %575 = vmatpush1.msra.mxu0 0.0
        %576 = vmatprep.subr.mxu0 0.0
        %577 = vmatpush1.msra.mxu0 0.0
        %578 = vmatprep.subr.mxu0 0.0
        %579 = vmatpush1.msra.mxu0 0.0
        %580 = vmatprep.subr.mxu0 0.0
        %581 = vmatpush1.msra.mxu0 0.0
        %582 = vmatprep.subr.mxu0 0.0
        %583 = vmatpush1.msra.mxu0 0.0
        %584 = vmatprep.subr.mxu0 0.0
        %585 = vmatpush1.msra.mxu0 0.0
        %586 = vmatprep.subr.mxu0 0.0
        %587 = vmatpush1.msra.mxu0 0.0
        %588 = vmatprep.subr.mxu0 0.0
        %589 = vmatpush1.msra.mxu0 0.0
        %590 = vmatprep.subr.mxu0 0.0
        %591 = vmatpush1.msra.mxu0 0.0
        %592 = vmatprep.subr.mxu0 0.0
        %593 = vmatpush1.msra.mxu0 0.0
        %594 = vmatprep.subr.mxu0 0.0
        %595 = vmatpush1.msra.mxu0 0.0
        %596 = vmatprep.subr.mxu0 0.0
        %597 = vmatpush1.msra.mxu0 0.0
        %598 = vmatprep.subr.mxu0 0.0
        %599 = vmatpush1.msra.mxu0 0.0
        %600 = vmatprep.subr.mxu0 0.0
        %601 = vmatpush1.msra.mxu0 0.0
        %602 = vmatprep.subr.mxu0 0.0
        %603 = vmatpush1.msra.mxu0 0.0
        %604 = vmatprep.subr.mxu0 0.0
        %605 = vmatpush1.msra.mxu0 %v456
        %606 = vmatprep.subr.mxu0 0.0
        %607 = vmatpush2.msra.mxu0 0.0
        %608 = vmatprep.subr.mxu0 0.0
        %609 = vmatpush2.msra.mxu0 0.0
        %610 = vmatprep.subr.mxu0 0.0
        %611 = vmatpush2.msra.mxu0 0.0
        %612 = vmatprep.subr.mxu0 0.0
        %613 = vmatpush2.msra.mxu0 0.0
        %614 = vmatprep.subr.mxu0 0.0
        %615 = vmatpush2.msra.mxu0 0.0
        %616 = vmatprep.subr.mxu0 0.0
        %617 = vmatpush2.msra.mxu0 0.0
        %618 = vmatprep.subr.mxu0 0.0
        %619 = vmatpush2.msra.mxu0 0.0
        %620 = vmatprep.subr.mxu0 0.0
        %621 = vmatpush2.msra.mxu0 0.0
        %622 = vmatprep.subr.mxu0 0.0
        %623 = vmatpush2.msra.mxu0 0.0
        %624 = vmatprep.subr.mxu0 0.0
        %625 = vmatpush2.msra.mxu0 0.0
        %626 = vmatprep.subr.mxu0 0.0
        %627 = vmatpush2.msra.mxu0 0.0
        %628 = vmatprep.subr.mxu0 0.0
        %629 = vmatpush2.msra.mxu0 0.0
        %630 = vmatprep.subr.mxu0 0.0
        %631 = vmatpush2.msra.mxu0 0.0
        %632 = vmatprep.subr.mxu0 0.0
        %633 = vmatpush2.msra.mxu0 0.0
        %634 = vmatprep.subr.mxu0 0.0
        %635 = vmatpush2.msra.mxu0 0.0
        %636 = vmatprep.subr.mxu0 0.0
        %637 = vmatpush2.msra.mxu0 0.0
        %638 = vmatprep.mubr.f32.mxu0 0.0
        %639 = vmatmul.mubr.f32.gmra.mxu0 %v572
        %v640 = vpop.f32.mrf.mxu0
        %v641 = vadd.f32 0.0, %v640
        %v642 = vpop.f32.mrf.mxu0
        %643 = vdwg.mxu0
        %644 = vst.msk [vmem:[#allocation2] sm:$0xff] %vm314, %v641
        %645 = vrot.lane.b32.xlu0 %v470, 96
        %v646 = vpop.permute.xlu0 %645
        %647 = vrot.lane.b32.xlu0 %v479, 96
        %v648 = vpop.permute.xlu0 %647
        %v649 = vsel %vm314, %v646, 0
        %v651 = vsel %vm314, %v648, 0
        %653 = vmatprep.subr.mxu0 0.0
        %654 = vmatpush1.xpose.msra.mxu0 0.0
        %655 = vmatprep.subr.mxu0 0.0
        %656 = vmatpush1.xpose.msra.mxu0 0.0
        %657 = vmatprep.subr.mxu0 0.0
        %658 = vmatpush1.xpose.msra.mxu0 0.0
        %659 = vmatprep.subr.mxu0 0.0
        %660 = vmatpush1.xpose.msra.mxu0 0.0
        %661 = vmatprep.subr.mxu0 0.0
        %662 = vmatpush1.xpose.msra.mxu0 0.0
        %663 = vmatprep.subr.mxu0 0.0
        %664 = vmatpush1.xpose.msra.mxu0 0.0
        %665 = vmatprep.subr.mxu0 0.0
        %666 = vmatpush1.xpose.msra.mxu0 0.0
        %667 = vmatprep.subr.mxu0 0.0
        %668 = vmatpush1.xpose.msra.mxu0 0.0
        %669 = vmatprep.subr.mxu0 0.0
        %670 = vmatpush1.xpose.msra.mxu0 0.0
        %671 = vmatprep.subr.mxu0 0.0
        %672 = vmatpush1.xpose.msra.mxu0 0.0
        %673 = vmatprep.subr.mxu0 0.0
        %674 = vmatpush1.xpose.msra.mxu0 0.0
        %675 = vmatprep.subr.mxu0 0.0
        %676 = vmatpush1.xpose.msra.mxu0 0.0
        %677 = vmatprep.subr.mxu0 0.0
        %678 = vmatpush1.xpose.msra.mxu0 0.0
        %679 = vmatprep.subr.mxu0 0.0
        %680 = vmatpush1.xpose.msra.mxu0 0.0
        %681 = vmatprep.subr.mxu0 0.0
        %682 = vmatpush1.xpose.msra.mxu0 0.0
        %683 = vmatprep.subr.mxu0 0.0
        %684 = vmatpush1.xpose.msra.mxu0 %v651
        %685 = vmatprep.subr.mxu0 0.0
        %686 = vmatpush2.xpose.msra.mxu0 0.0
        %687 = vmatprep.subr.mxu0 0.0
        %688 = vmatpush2.xpose.msra.mxu0 0.0
        %689 = vmatprep.subr.mxu0 0.0
        %690 = vmatpush2.xpose.msra.mxu0 0.0
        %691 = vmatprep.subr.mxu0 0.0
        %692 = vmatpush2.xpose.msra.mxu0 0.0
        %693 = vmatprep.subr.mxu0 0.0
        %694 = vmatpush2.xpose.msra.mxu0 0.0
        %695 = vmatprep.subr.mxu0 0.0
        %696 = vmatpush2.xpose.msra.mxu0 0.0
        %697 = vmatprep.subr.mxu0 0.0
        %698 = vmatpush2.xpose.msra.mxu0 0.0
        %699 = vmatprep.subr.mxu0 0.0
        %700 = vmatpush2.xpose.msra.mxu0 0.0
        %701 = vmatprep.subr.mxu0 0.0
        %702 = vmatpush2.xpose.msra.mxu0 0.0
        %703 = vmatprep.subr.mxu0 0.0
        %704 = vmatpush2.xpose.msra.mxu0 0.0
        %705 = vmatprep.subr.mxu0 0.0
        %706 = vmatpush2.xpose.msra.mxu0 0.0
        %707 = vmatprep.subr.mxu0 0.0
        %708 = vmatpush2.xpose.msra.mxu0 0.0
        %709 = vmatprep.subr.mxu0 0.0
        %710 = vmatpush2.xpose.msra.mxu0 0.0
        %711 = vmatprep.subr.mxu0 0.0
        %712 = vmatpush2.xpose.msra.mxu0 0.0
        %713 = vmatprep.subr.mxu0 0.0
        %714 = vmatpush2.xpose.msra.mxu0 0.0
        %715 = vmatprep.subr.mxu0 0.0
        %716 = vmatpush2.xpose.msra.mxu0 0.0
        %717 = vmatprep.mubr.f32.mxu0 0.0
        %718 = vmatmul.mubr.f32.gmra.mxu0 %v649
        %v719 = vpop.f32.mrf.mxu0
        %v720 = vadd.f32 0.0, %v719
        %v721 = vpop.f32.mrf.mxu0
        %722 = vdwg.mxu0
        %v723 = vmul.f32 %v720, 0.17677669
        %v724 = vadd.f32 %v723, %v480
        %v725 = vsel %vm559, %v724, -inf
        %726 = vmax.xlane.f32.xlu0 %v725
        %v727 = vpop.xlane.xlu0 %726
        %v728 = vsub.f32 %v724, %v727
        %v729 = vmul.f32 %v728, 1.442695
        %v730 = vpow.pop %v729
        %v731 = vsel %vm559, %v730, 0.0
        %732 = vadd.xlane.f32.xlu0 %v731
        %v733 = vpop.xlane.xlu0 %732
        %v734 = vrcp.pop %v733
        %v735 = vmul.f32 %v730, %v734
        %737 = vrot.lane.b32.xlu0 %v456, 96
        %v738 = vpop.permute.xlu0 %737
        %v741 = vsel %vm559, %v735, 0
        %743 = vmatprep.subr.mxu0 0.0
        %744 = vmatpush1.msra.mxu0 0.0
        %745 = vmatprep.subr.mxu0 0.0
        %746 = vmatpush1.msra.mxu0 0.0
        %747 = vmatprep.subr.mxu0 0.0
        %748 = vmatpush1.msra.mxu0 0.0
        %749 = vmatprep.subr.mxu0 0.0
        %750 = vmatpush1.msra.mxu0 0.0
        %751 = vmatprep.subr.mxu0 0.0
        %752 = vmatpush1.msra.mxu0 0.0
        %753 = vmatprep.subr.mxu0 0.0
        %754 = vmatpush1.msra.mxu0 0.0
        %755 = vmatprep.subr.mxu0 0.0
        %756 = vmatpush1.msra.mxu0 0.0
        %757 = vmatprep.subr.mxu0 0.0
        %758 = vmatpush1.msra.mxu0 0.0
        %759 = vmatprep.subr.mxu0 0.0
        %760 = vmatpush1.msra.mxu0 0.0
        %761 = vmatprep.subr.mxu0 0.0
        %762 = vmatpush1.msra.mxu0 0.0
        %763 = vmatprep.subr.mxu0 0.0
        %764 = vmatpush1.msra.mxu0 0.0
        %765 = vmatprep.subr.mxu0 0.0
        %766 = vmatpush1.msra.mxu0 0.0
        %767 = vmatprep.subr.mxu0 0.0
        %768 = vmatpush1.msra.mxu0 0.0
        %769 = vmatprep.subr.mxu0 0.0
        %770 = vmatpush1.msra.mxu0 0.0
        %771 = vmatprep.subr.mxu0 0.0
        %772 = vmatpush1.msra.mxu0 0.0
        %773 = vmatprep.subr.mxu0 0.0
        %774 = vmatpush1.msra.mxu0 %v738
        %775 = vmatprep.subr.mxu0 0.0
        %776 = vmatpush2.msra.mxu0 0.0
        %777 = vmatprep.subr.mxu0 0.0
        %778 = vmatpush2.msra.mxu0 0.0
        %779 = vmatprep.subr.mxu0 0.0
        %780 = vmatpush2.msra.mxu0 0.0
        %781 = vmatprep.subr.mxu0 0.0
        %782 = vmatpush2.msra.mxu0 0.0
        %783 = vmatprep.subr.mxu0 0.0
        %784 = vmatpush2.msra.mxu0 0.0
        %785 = vmatprep.subr.mxu0 0.0
        %786 = vmatpush2.msra.mxu0 0.0
        %787 = vmatprep.subr.mxu0 0.0
        %788 = vmatpush2.msra.mxu0 0.0
        %789 = vmatprep.subr.mxu0 0.0
        %790 = vmatpush2.msra.mxu0 0.0
        %791 = vmatprep.subr.mxu0 0.0
        %792 = vmatpush2.msra.mxu0 0.0
        %793 = vmatprep.subr.mxu0 0.0
        %794 = vmatpush2.msra.mxu0 0.0
        %795 = vmatprep.subr.mxu0 0.0
        %796 = vmatpush2.msra.mxu0 0.0
        %797 = vmatprep.subr.mxu0 0.0
        %798 = vmatpush2.msra.mxu0 0.0
        %799 = vmatprep.subr.mxu0 0.0
        %800 = vmatpush2.msra.mxu0 0.0
        %801 = vmatprep.subr.mxu0 0.0
        %802 = vmatpush2.msra.mxu0 0.0
        %803 = vmatprep.subr.mxu0 0.0
        %804 = vmatpush2.msra.mxu0 0.0
        %805 = vmatprep.subr.mxu0 0.0
        %806 = vmatpush2.msra.mxu0 0.0
        %807 = vmatprep.mubr.f32.mxu0 0.0
        %808 = vmatmul.mubr.f32.gmra.mxu0 %v741
        %v809 = vpop.f32.mrf.mxu0
        %v810 = vadd.f32 0.0, %v809
        %v811 = vpop.f32.mrf.mxu0
        %812 = vdwg.mxu0
        %814 = vrot.lane.b32.xlu0 %v810, 32
        %v815 = vpop.permute.xlu0 %814
        %vm817 = vcmask 523520
        %818 = vst.msk [vmem:[#allocation2] sm:$0xff] %vm817, %v815
        %819 = vrot.lane.b32.xlu0 %v470, 64
        %v820 = vpop.permute.xlu0 %819
        %821 = vrot.lane.b32.xlu0 %v479, 64
        %v822 = vpop.permute.xlu0 %821
        %v823 = vsel %vm314, %v820, 0
        %v825 = vsel %vm314, %v822, 0
        %827 = vmatprep.subr.mxu0 0.0
        %828 = vmatpush1.xpose.msra.mxu0 0.0
        %829 = vmatprep.subr.mxu0 0.0
        %830 = vmatpush1.xpose.msra.mxu0 0.0
        %831 = vmatprep.subr.mxu0 0.0
        %832 = vmatpush1.xpose.msra.mxu0 0.0
        %833 = vmatprep.subr.mxu0 0.0
        %834 = vmatpush1.xpose.msra.mxu0 0.0
        %835 = vmatprep.subr.mxu0 0.0
        %836 = vmatpush1.xpose.msra.mxu0 0.0
        %837 = vmatprep.subr.mxu0 0.0
        %838 = vmatpush1.xpose.msra.mxu0 0.0
        %839 = vmatprep.subr.mxu0 0.0
        %840 = vmatpush1.xpose.msra.mxu0 0.0
        %841 = vmatprep.subr.mxu0 0.0
        %842 = vmatpush1.xpose.msra.mxu0 0.0
        %843 = vmatprep.subr.mxu0 0.0
        %844 = vmatpush1.xpose.msra.mxu0 0.0
        %845 = vmatprep.subr.mxu0 0.0
        %846 = vmatpush1.xpose.msra.mxu0 0.0
        %847 = vmatprep.subr.mxu0 0.0
        %848 = vmatpush1.xpose.msra.mxu0 0.0
        %849 = vmatprep.subr.mxu0 0.0
        %850 = vmatpush1.xpose.msra.mxu0 0.0
        %851 = vmatprep.subr.mxu0 0.0
        %852 = vmatpush1.xpose.msra.mxu0 0.0
        %853 = vmatprep.subr.mxu0 0.0
        %854 = vmatpush1.xpose.msra.mxu0 0.0
        %855 = vmatprep.subr.mxu0 0.0
        %856 = vmatpush1.xpose.msra.mxu0 0.0
        %857 = vmatprep.subr.mxu0 0.0
        %858 = vmatpush1.xpose.msra.mxu0 %v825
        %859 = vmatprep.subr.mxu0 0.0
        %860 = vmatpush2.xpose.msra.mxu0 0.0
        %861 = vmatprep.subr.mxu0 0.0
        %862 = vmatpush2.xpose.msra.mxu0 0.0
        %863 = vmatprep.subr.mxu0 0.0
        %864 = vmatpush2.xpose.msra.mxu0 0.0
        %865 = vmatprep.subr.mxu0 0.0
        %866 = vmatpush2.xpose.msra.mxu0 0.0
        %867 = vmatprep.subr.mxu0 0.0
        %868 = vmatpush2.xpose.msra.mxu0 0.0
        %869 = vmatprep.subr.mxu0 0.0
        %870 = vmatpush2.xpose.msra.mxu0 0.0
        %871 = vmatprep.subr.mxu0 0.0
        %872 = vmatpush2.xpose.msra.mxu0 0.0
        %873 = vmatprep.subr.mxu0 0.0
        %874 = vmatpush2.xpose.msra.mxu0 0.0
        %875 = vmatprep.subr.mxu0 0.0
        %876 = vmatpush2.xpose.msra.mxu0 0.0
        %877 = vmatprep.subr.mxu0 0.0
        %878 = vmatpush2.xpose.msra.mxu0 0.0
        %879 = vmatprep.subr.mxu0 0.0
        %880 = vmatpush2.xpose.msra.mxu0 0.0
        %881 = vmatprep.subr.mxu0 0.0
        %882 = vmatpush2.xpose.msra.mxu0 0.0
        %883 = vmatprep.subr.mxu0 0.0
        %884 = vmatpush2.xpose.msra.mxu0 0.0
        %885 = vmatprep.subr.mxu0 0.0
        %886 = vmatpush2.xpose.msra.mxu0 0.0
        %887 = vmatprep.subr.mxu0 0.0
        %888 = vmatpush2.xpose.msra.mxu0 0.0
        %889 = vmatprep.subr.mxu0 0.0
        %890 = vmatpush2.xpose.msra.mxu0 0.0
        %891 = vmatprep.mubr.f32.mxu0 0.0
        %892 = vmatmul.mubr.f32.gmra.mxu0 %v823
        %v893 = vpop.f32.mrf.mxu0
        %v894 = vadd.f32 0.0, %v893
        %v895 = vpop.f32.mrf.mxu0
        %896 = vdwg.mxu0
        %v897 = vmul.f32 %v894, 0.17677669
        %v898 = vadd.f32 %v897, %v480
        %v899 = vsel %vm559, %v898, -inf
        %900 = vmax.xlane.f32.xlu0 %v899
        %v901 = vpop.xlane.xlu0 %900
        %v902 = vsub.f32 %v898, %v901
        %v903 = vmul.f32 %v902, 1.442695
        %v904 = vpow.pop %v903
        %v905 = vsel %vm559, %v904, 0.0
        %906 = vadd.xlane.f32.xlu0 %v905
        %v907 = vpop.xlane.xlu0 %906
        %v908 = vrcp.pop %v907
        %v909 = vmul.f32 %v904, %v908
        %910 = vrot.lane.b32.xlu0 %v456, 64
        %v911 = vpop.permute.xlu0 %910
        %v914 = vsel %vm559, %v909, 0
        %916 = vmatprep.subr.mxu0 0.0
        %917 = vmatpush1.msra.mxu0 0.0
        %918 = vmatprep.subr.mxu0 0.0
        %919 = vmatpush1.msra.mxu0 0.0
        %920 = vmatprep.subr.mxu0 0.0
        %921 = vmatpush1.msra.mxu0 0.0
        %922 = vmatprep.subr.mxu0 0.0
        %923 = vmatpush1.msra.mxu0 0.0
        %924 = vmatprep.subr.mxu0 0.0
        %925 = vmatpush1.msra.mxu0 0.0
        %926 = vmatprep.subr.mxu0 0.0
        %927 = vmatpush1.msra.mxu0 0.0
        %928 = vmatprep.subr.mxu0 0.0
        %929 = vmatpush1.msra.mxu0 0.0
        %930 = vmatprep.subr.mxu0 0.0
        %931 = vmatpush1.msra.mxu0 0.0
        %932 = vmatprep.subr.mxu0 0.0
        %933 = vmatpush1.msra.mxu0 0.0
        %934 = vmatprep.subr.mxu0 0.0
        %935 = vmatpush1.msra.mxu0 0.0
        %936 = vmatprep.subr.mxu0 0.0
        %937 = vmatpush1.msra.mxu0 0.0
        %938 = vmatprep.subr.mxu0 0.0
        %939 = vmatpush1.msra.mxu0 0.0
        %940 = vmatprep.subr.mxu0 0.0
        %941 = vmatpush1.msra.mxu0 0.0
        %942 = vmatprep.subr.mxu0 0.0
        %943 = vmatpush1.msra.mxu0 0.0
        %944 = vmatprep.subr.mxu0 0.0
        %945 = vmatpush1.msra.mxu0 0.0
        %946 = vmatprep.subr.mxu0 0.0
        %947 = vmatpush1.msra.mxu0 %v911
        %948 = vmatprep.subr.mxu0 0.0
        %949 = vmatpush2.msra.mxu0 0.0
        %950 = vmatprep.subr.mxu0 0.0
        %951 = vmatpush2.msra.mxu0 0.0
        %952 = vmatprep.subr.mxu0 0.0
        %953 = vmatpush2.msra.mxu0 0.0
        %954 = vmatprep.subr.mxu0 0.0
        %955 = vmatpush2.msra.mxu0 0.0
        %956 = vmatprep.subr.mxu0 0.0
        %957 = vmatpush2.msra.mxu0 0.0
        %958 = vmatprep.subr.mxu0 0.0
        %959 = vmatpush2.msra.mxu0 0.0
        %960 = vmatprep.subr.mxu0 0.0
        %961 = vmatpush2.msra.mxu0 0.0
        %962 = vmatprep.subr.mxu0 0.0
        %963 = vmatpush2.msra.mxu0 0.0
        %964 = vmatprep.subr.mxu0 0.0
        %965 = vmatpush2.msra.mxu0 0.0
        %966 = vmatprep.subr.mxu0 0.0
        %967 = vmatpush2.msra.mxu0 0.0
        %968 = vmatprep.subr.mxu0 0.0
        %969 = vmatpush2.msra.mxu0 0.0
        %970 = vmatprep.subr.mxu0 0.0
        %971 = vmatpush2.msra.mxu0 0.0
        %972 = vmatprep.subr.mxu0 0.0
        %973 = vmatpush2.msra.mxu0 0.0
        %974 = vmatprep.subr.mxu0 0.0
        %975 = vmatpush2.msra.mxu0 0.0
        %976 = vmatprep.subr.mxu0 0.0
        %977 = vmatpush2.msra.mxu0 0.0
        %978 = vmatprep.subr.mxu0 0.0
        %979 = vmatpush2.msra.mxu0 0.0
        %980 = vmatprep.mubr.f32.mxu0 0.0
        %981 = vmatmul.mubr.f32.gmra.mxu0 %v914
        %v982 = vpop.f32.mrf.mxu0
        %v983 = vadd.f32 0.0, %v982
        %v984 = vpop.f32.mrf.mxu0
        %985 = vdwg.mxu0
        %987 = vrot.lane.b32.xlu0 %v983, 64
        %v988 = vpop.permute.xlu0 %987
        %vm990 = vcmask 785920
        %991 = vst.msk [vmem:[#allocation2] sm:$0xff] %vm990, %v988
        %992 = vrot.lane.b32.xlu0 %v470, 32
        %v993 = vpop.permute.xlu0 %992
        %994 = vrot.lane.b32.xlu0 %v479, 32
        %v995 = vpop.permute.xlu0 %994
        %v996 = vsel %vm314, %v993, 0
        %v998 = vsel %vm314, %v995, 0
        %1000 = vmatprep.subr.mxu0 0.0
        %1001 = vmatpush1.xpose.msra.mxu0 0.0
        %1002 = vmatprep.subr.mxu0 0.0
        %1003 = vmatpush1.xpose.msra.mxu0 0.0
        %1004 = vmatprep.subr.mxu0 0.0
        %1005 = vmatpush1.xpose.msra.mxu0 0.0
        %1006 = vmatprep.subr.mxu0 0.0
        %1007 = vmatpush1.xpose.msra.mxu0 0.0
        %1008 = vmatprep.subr.mxu0 0.0
        %1009 = vmatpush1.xpose.msra.mxu0 0.0
        %1010 = vmatprep.subr.mxu0 0.0
        %1011 = vmatpush1.xpose.msra.mxu0 0.0
        %1012 = vmatprep.subr.mxu0 0.0
        %1013 = vmatpush1.xpose.msra.mxu0 0.0
        %1014 = vmatprep.subr.mxu0 0.0
        %1015 = vmatpush1.xpose.msra.mxu0 0.0
        %1016 = vmatprep.subr.mxu0 0.0
        %1017 = vmatpush1.xpose.msra.mxu0 0.0
        %1018 = vmatprep.subr.mxu0 0.0
        %1019 = vmatpush1.xpose.msra.mxu0 0.0
        %1020 = vmatprep.subr.mxu0 0.0
        %1021 = vmatpush1.xpose.msra.mxu0 0.0
        %1022 = vmatprep.subr.mxu0 0.0
        %1023 = vmatpush1.xpose.msra.mxu0 0.0
        %1024 = vmatprep.subr.mxu0 0.0
        %1025 = vmatpush1.xpose.msra.mxu0 0.0
        %1026 = vmatprep.subr.mxu0 0.0
        %1027 = vmatpush1.xpose.msra.mxu0 0.0
        %1028 = vmatprep.subr.mxu0 0.0
        %1029 = vmatpush1.xpose.msra.mxu0 0.0
        %1030 = vmatprep.subr.mxu0 0.0
        %1031 = vmatpush1.xpose.msra.mxu0 %v998
        %1032 = vmatprep.subr.mxu0 0.0
        %1033 = vmatpush2.xpose.msra.mxu0 0.0
        %1034 = vmatprep.subr.mxu0 0.0
        %1035 = vmatpush2.xpose.msra.mxu0 0.0
        %1036 = vmatprep.subr.mxu0 0.0
        %1037 = vmatpush2.xpose.msra.mxu0 0.0
        %1038 = vmatprep.subr.mxu0 0.0
        %1039 = vmatpush2.xpose.msra.mxu0 0.0
        %1040 = vmatprep.subr.mxu0 0.0
        %1041 = vmatpush2.xpose.msra.mxu0 0.0
        %1042 = vmatprep.subr.mxu0 0.0
        %1043 = vmatpush2.xpose.msra.mxu0 0.0
        %1044 = vmatprep.subr.mxu0 0.0
        %1045 = vmatpush2.xpose.msra.mxu0 0.0
        %1046 = vmatprep.subr.mxu0 0.0
        %1047 = vmatpush2.xpose.msra.mxu0 0.0
        %1048 = vmatprep.subr.mxu0 0.0
        %1049 = vmatpush2.xpose.msra.mxu0 0.0
        %1050 = vmatprep.subr.mxu0 0.0
        %1051 = vmatpush2.xpose.msra.mxu0 0.0
        %1052 = vmatprep.subr.mxu0 0.0
        %1053 = vmatpush2.xpose.msra.mxu0 0.0
        %1054 = vmatprep.subr.mxu0 0.0
        %1055 = vmatpush2.xpose.msra.mxu0 0.0
        %1056 = vmatprep.subr.mxu0 0.0
        %1057 = vmatpush2.xpose.msra.mxu0 0.0
        %1058 = vmatprep.subr.mxu0 0.0
        %1059 = vmatpush2.xpose.msra.mxu0 0.0
        %1060 = vmatprep.subr.mxu0 0.0
        %1061 = vmatpush2.xpose.msra.mxu0 0.0
        %1062 = vmatprep.subr.mxu0 0.0
        %1063 = vmatpush2.xpose.msra.mxu0 0.0
        %1064 = vmatprep.mubr.f32.mxu0 0.0
        %1065 = vmatmul.mubr.f32.gmra.mxu0 %v996
        %v1066 = vpop.f32.mrf.mxu0
        %v1067 = vadd.f32 0.0, %v1066
        %v1068 = vpop.f32.mrf.mxu0
        %1069 = vdwg.mxu0
        %v1070 = vmul.f32 %v1067, 0.17677669
        %v1071 = vadd.f32 %v1070, %v480
        %v1072 = vsel %vm559, %v1071, -inf
        %1073 = vmax.xlane.f32.xlu0 %v1072
        %v1074 = vpop.xlane.xlu0 %1073
        %v1075 = vsub.f32 %v1071, %v1074
        %v1076 = vmul.f32 %v1075, 1.442695
        %v1077 = vpow.pop %v1076
        %v1078 = vsel %vm559, %v1077, 0.0
        %1079 = vadd.xlane.f32.xlu0 %v1078
        %v1080 = vpop.xlane.xlu0 %1079
        %v1081 = vrcp.pop %v1080
        %v1082 = vmul.f32 %v1077, %v1081
        %1083 = vrot.lane.b32.xlu0 %v456, 32
        %v1084 = vpop.permute.xlu0 %1083
        %v1087 = vsel %vm559, %v1082, 0
        %1089 = vmatprep.subr.mxu0 0.0
        %1090 = vmatpush1.msra.mxu0 0.0
        %1091 = vmatprep.subr.mxu0 0.0
        %1092 = vmatpush1.msra.mxu0 0.0
        %1093 = vmatprep.subr.mxu0 0.0
        %1094 = vmatpush1.msra.mxu0 0.0
        %1095 = vmatprep.subr.mxu0 0.0
        %1096 = vmatpush1.msra.mxu0 0.0
        %1097 = vmatprep.subr.mxu0 0.0
        %1098 = vmatpush1.msra.mxu0 0.0
        %1099 = vmatprep.subr.mxu0 0.0
        %1100 = vmatpush1.msra.mxu0 0.0
        %1101 = vmatprep.subr.mxu0 0.0
        %1102 = vmatpush1.msra.mxu0 0.0
        %1103 = vmatprep.subr.mxu0 0.0
        %1104 = vmatpush1.msra.mxu0 0.0
        %1105 = vmatprep.subr.mxu0 0.0
        %1106 = vmatpush1.msra.mxu0 0.0
        %1107 = vmatprep.subr.mxu0 0.0
        %1108 = vmatpush1.msra.mxu0 0.0
        %1109 = vmatprep.subr.mxu0 0.0
        %1110 = vmatpush1.msra.mxu0 0.0
        %1111 = vmatprep.subr.mxu0 0.0
        %1112 = vmatpush1.msra.mxu0 0.0
        %1113 = vmatprep.subr.mxu0 0.0
        %1114 = vmatpush1.msra.mxu0 0.0
        %1115 = vmatprep.subr.mxu0 0.0
        %1116 = vmatpush1.msra.mxu0 0.0
        %1117 = vmatprep.subr.mxu0 0.0
        %1118 = vmatpush1.msra.mxu0 0.0
        %1119 = vmatprep.subr.mxu0 0.0
        %1120 = vmatpush1.msra.mxu0 %v1084
        %1121 = vmatprep.subr.mxu0 0.0
        %1122 = vmatpush2.msra.mxu0 0.0
        %1123 = vmatprep.subr.mxu0 0.0
        %1124 = vmatpush2.msra.mxu0 0.0
        %1125 = vmatprep.subr.mxu0 0.0
        %1126 = vmatpush2.msra.mxu0 0.0
        %1127 = vmatprep.subr.mxu0 0.0
        %1128 = vmatpush2.msra.mxu0 0.0
        %1129 = vmatprep.subr.mxu0 0.0
        %1130 = vmatpush2.msra.mxu0 0.0
        %1131 = vmatprep.subr.mxu0 0.0
        %1132 = vmatpush2.msra.mxu0 0.0
        %1133 = vmatprep.subr.mxu0 0.0
        %1134 = vmatpush2.msra.mxu0 0.0
        %1135 = vmatprep.subr.mxu0 0.0
        %1136 = vmatpush2.msra.mxu0 0.0
        %1137 = vmatprep.subr.mxu0 0.0
        %1138 = vmatpush2.msra.mxu0 0.0
        %1139 = vmatprep.subr.mxu0 0.0
        %1140 = vmatpush2.msra.mxu0 0.0
        %1141 = vmatprep.subr.mxu0 0.0
        %1142 = vmatpush2.msra.mxu0 0.0
        %1143 = vmatprep.subr.mxu0 0.0
        %1144 = vmatpush2.msra.mxu0 0.0
        %1145 = vmatprep.subr.mxu0 0.0
        %1146 = vmatpush2.msra.mxu0 0.0
        %1147 = vmatprep.subr.mxu0 0.0
        %1148 = vmatpush2.msra.mxu0 0.0
        %1149 = vmatprep.subr.mxu0 0.0
        %1150 = vmatpush2.msra.mxu0 0.0
        %1151 = vmatprep.subr.mxu0 0.0
        %1152 = vmatpush2.msra.mxu0 0.0
        %1153 = vmatprep.mubr.f32.mxu0 0.0
        %1154 = vmatmul.mubr.f32.gmra.mxu0 %v1087
        %v1155 = vpop.f32.mrf.mxu0
        %v1156 = vadd.f32 0.0, %v1155
        %v1157 = vpop.f32.mrf.mxu0
        %1158 = vdwg.mxu0
        %1160 = vrot.lane.b32.xlu0 %v1156, 96
        %v1161 = vpop.permute.xlu0 %1160
        %vm1163 = vcmask 1048320
        %1164 = vst.msk [vmem:[#allocation2] sm:$0xff] %vm1163, %v1161
        %v1165 = vld [vmem:[#allocation2] sm:$0xff]
        %v1166 = vld [vmem:[%s2] sm:$0xff]
        %v1167 = vld [vmem:[%s2 + $0x8] sm:$0xff]
        %v1168 = vld [vmem:[%s2 + $0x10] sm:$0xff]
        %v1169 = vld [vmem:[%s2 + $0x18] sm:$0xff]
        %v1170 = vld [vmem:[%s2 + $0x20] sm:$0xff]
        %v1171 = vld [vmem:[%s2 + $0x28] sm:$0xff]
        %v1172 = vld [vmem:[%s2 + $0x30] sm:$0xff]
        %v1173 = vld [vmem:[%s2 + $0x38] sm:$0xff]
        %v1174 = vld [vmem:[%s2 + $0x40] sm:$0xff]
        %v1175 = vld [vmem:[%s2 + $0x48] sm:$0xff]
        %v1176 = vld [vmem:[%s2 + $0x50] sm:$0xff]
        %v1177 = vld [vmem:[%s2 + $0x58] sm:$0xff]
        %v1178 = vld [vmem:[%s2 + $0x60] sm:$0xff]
        %v1179 = vld [vmem:[%s2 + $0x68] sm:$0xff]
        %v1180 = vld [vmem:[%s2 + $0x70] sm:$0xff]
        %v1181 = vld [vmem:[%s2 + $0x78] sm:$0xff]
        %v1182 = vld [vmem:[%s3] sm:$0x1]
        %v1184 = vlaneseq
        %v1185 = vshrl.u32 %v1184, 7
        %v1186 = vsub.s32 0, %v1185
        %v1187 = vrot.slane %v1182, %v1186
        %1189 = vmatprep.subr.mxu0 0.0
        %1190 = vmatpush1.msra.mxu0 %v1181
        %1191 = vmatprep.subr.mxu0 0.0
        %1192 = vmatpush1.msra.mxu0 %v1180
        %1193 = vmatprep.subr.mxu0 0.0
        %1194 = vmatpush1.msra.mxu0 %v1179
        %1195 = vmatprep.subr.mxu0 0.0
        %1196 = vmatpush1.msra.mxu0 %v1178
        %1197 = vmatprep.subr.mxu0 0.0
        %1198 = vmatpush1.msra.mxu0 %v1177
        %1199 = vmatprep.subr.mxu0 0.0
        %1200 = vmatpush1.msra.mxu0 %v1176
        %1201 = vmatprep.subr.mxu0 0.0
        %1202 = vmatpush1.msra.mxu0 %v1175
        %1203 = vmatprep.subr.mxu0 0.0
        %1204 = vmatpush1.msra.mxu0 %v1174
        %1205 = vmatprep.subr.mxu0 0.0
        %1206 = vmatpush1.msra.mxu0 %v1173
        %1207 = vmatprep.subr.mxu0 0.0
        %1208 = vmatpush1.msra.mxu0 %v1172
        %1209 = vmatprep.subr.mxu0 0.0
        %1210 = vmatpush1.msra.mxu0 %v1171
        %1211 = vmatprep.subr.mxu0 0.0
        %1212 = vmatpush1.msra.mxu0 %v1170
        %1213 = vmatprep.subr.mxu0 0.0
        %1214 = vmatpush1.msra.mxu0 %v1169
        %1215 = vmatprep.subr.mxu0 0.0
        %1216 = vmatpush1.msra.mxu0 %v1168
        %1217 = vmatprep.subr.mxu0 0.0
        %1218 = vmatpush1.msra.mxu0 %v1167
        %1219 = vmatprep.subr.mxu0 0.0
        %1220 = vmatpush1.msra.mxu0 %v1166
        %1221 = vmatprep.subr.mxu0 0.0
        %1222 = vmatpush2.msra.mxu0 0.0
        %1223 = vmatprep.subr.mxu0 0.0
        %1224 = vmatpush2.msra.mxu0 0.0
        %1225 = vmatprep.subr.mxu0 0.0
        %1226 = vmatpush2.msra.mxu0 0.0
        %1227 = vmatprep.subr.mxu0 0.0
        %1228 = vmatpush2.msra.mxu0 0.0
        %1229 = vmatprep.subr.mxu0 0.0
        %1230 = vmatpush2.msra.mxu0 0.0
        %1231 = vmatprep.subr.mxu0 0.0
        %1232 = vmatpush2.msra.mxu0 0.0
        %1233 = vmatprep.subr.mxu0 0.0
        %1234 = vmatpush2.msra.mxu0 0.0
        %1235 = vmatprep.subr.mxu0 0.0
        %1236 = vmatpush2.msra.mxu0 0.0
        %1237 = vmatprep.subr.mxu0 0.0
        %1238 = vmatpush2.msra.mxu0 0.0
        %1239 = vmatprep.subr.mxu0 0.0
        %1240 = vmatpush2.msra.mxu0 0.0
        %1241 = vmatprep.subr.mxu0 0.0
        %1242 = vmatpush2.msra.mxu0 0.0
        %1243 = vmatprep.subr.mxu0 0.0
        %1244 = vmatpush2.msra.mxu0 0.0
        %1245 = vmatprep.subr.mxu0 0.0
        %1246 = vmatpush2.msra.mxu0 0.0
        %1247 = vmatprep.subr.mxu0 0.0
        %1248 = vmatpush2.msra.mxu0 0.0
        %1249 = vmatprep.subr.mxu0 0.0
        %1250 = vmatpush2.msra.mxu0 0.0
        %1251 = vmatprep.subr.mxu0 0.0
        %1252 = vmatpush2.msra.mxu0 0.0
        %1253 = vmatprep.mubr.f32.mxu0 0.0
        %1254 = vmatmul.mubr.f32.gmra.mxu0 %v1165
        %v1255 = vpop.f32.mrf.mxu0
        %v1256 = vadd.f32 %v1187, %v1255
        %v1257 = vpop.f32.mrf.mxu0
        %1258 = vdwg.mxu0
        %1259 = vst.msk [vmem:[%s296] sm:$0xff] %vm314, %v1256
        %s1260 = sand.u32 %s203, 1
        %s1261 = scalar_lea.sflag [#allocation4], %s1260
        %s1262 = sand.u32 %s203, 1
        %s1263 = smul.addr %s1262, 8
        %s1264 = scalar_lea.vmem [#allocation3], %s1263
        // Predicated region
        $region53: #{tpu_custom_call.1} parent=51 // pred_check
          %p1265 = pneg %p213
        $region54: #{tpu_custom_call.1} parent=51 // pred_check_branch
          %1267 = sbr.rel (%p1265) target = $region56
        $region55: #{tpu_custom_call.1} parent=51 // pred_region
          %s1269 = ssub.s32 128, 128
          %1270 = vsyncadd %s1261, %s1269
          %s1271 = smul.addr %s22, 128
          %s1272 = scalar_lea.hbm %s8, %s1271
          %s1274 = sshll.u32 %s1264, 4
          %s1275 = int_to_ptr.vmem [resolvable:$true] %s1274
          %1277 = dma.vmem_to_hbm [thread:$0]  %s1275, 128, %s1272, %s1261
        $region56: #{tpu_custom_call.1} parent=51 // pred_fallthru
          _
      $region52: #{tpu_custom_call.1} parent=5 // pred_fallthru
        _
      %p1278 = scmp.le.s32.totalorder 2, %s17
      // Predicated region
      $region57: #{tpu_custom_call.1} parent=5 // pred_check
        %p1279 = pneg %p1278
      $region58: #{tpu_custom_call.1} parent=5 // pred_check_branch
        %1281 = sbr.rel (%p1279) target = $region60
      $region59: #{tpu_custom_call.1} parent=5 // pred_region
        %s1282 = ssub.s32 %s17, 2
        // Predicated region
        $region61: #{tpu_custom_call.1} parent=59 // pred_check
          %p1283 = pneg %p219
        $region62: #{tpu_custom_call.1} parent=59 // pred_check_branch
          %1285 = sbr.rel (%p1283) target = $region64
        $region63: #{tpu_custom_call.1} parent=59 // pred_region
          %s1286 = sand.u32 %s204, 1
          %s1287 = scalar_lea.sflag [#allocation4], %s1286
          %s1288 = sand.u32 %s204, 1
          %s1289 = smul.addr %s1288, 8
          %s1290 = scalar_lea.vmem [#allocation3], %s1289
          %1291 = dma.done %s1287, 128
        $region64: #{tpu_custom_call.1} parent=59 // pred_fallthru
          _
      $region60: #{tpu_custom_call.1} parent=5 // pred_fallthru
        _
    $region6: #{tpu_custom_call.1} parent=1 // loop_footer
      %s21 = sadd.s32 1, %s17
    $region7: #{tpu_custom_call.1} parent=1 // loop_footer_branch
      %16 = sbr.rel target = $region3
    $region8: #{tpu_custom_call.1} parent=1 // loop_exit
      _
    %1292 = vsyncpa [#allocation4], 1
    %s1293 = scalar_lea.sflag [#allocation4], 1
    %1294 = vsyncpa %s1293, 1

</llo_original>
